<compile_context>
chip_gen: v7x
topology: tpu7x:2x2x1
jax: 0.10.0
libtpu: 0.0.40
codegen_flags: <defaults>
</compile_context>

<pallas_src>
import functools

import jax
import jax.numpy as jnp
import numpy as np
from jax.experimental import pallas as pl
from jax.experimental.pallas import tpu as pltpu

KH = 5
KW = 5
PAD = KH // 2  # 'same' padding for k=5
OC = 20       # conv out_channels (folded into the averaged filter)


def preconv_kernel(w_ref, x_ref, o_ref):
    """Mean-folded 5x5 'same' conv over a block of time-frames (T on lanes).

    w_ref: SMEM f32[KH*KW]           channel-averaged Conv2d filter
    x_ref: VMEM f32[H+4, W+4, Tb]    zero-padded (H, W) frames, T on lanes
    o_ref: VMEM f32[H, W, Tb]
    """
    H, W, Tb = o_ref.shape

    # Hoist all 25 SMEM scalar reads out of the accumulation loops.
    ws = [w_ref[i] for i in range(KH * KW)]

    # Chunk rows of H so the live accumulator stays small in vregs:
    #   one acc chunk uses hb * ceil(W/8) * ceil(Tb/128) vregs.
    vregs_per_row = max(1, -(-W // 8)) * max(1, -(-Tb // 128))
    hb_max = max(1, 16 // vregs_per_row)

    h0 = 0
    while h0 < H:  # static (trace-time) loop; H is a compile-time block dim
        hb = min(hb_max, H - h0)
        acc = jnp.zeros((hb, W, Tb), jnp.float32)
        for ki in range(KH):
            for kj in range(KW):
                tap = x_ref[h0 + ki:h0 + ki + hb, kj:kj + W, :]
                acc = acc + ws[ki * KW + kj] * tap
        o_ref[h0:h0 + hb, :, :] = acc
        h0 += hb


@functools.partial(jax.jit, static_argnames=())
def preconv_forward(x, weight):
    """x: (1, 1, H, W, T) f32, weight: (OC, 1, KH, KW) f32 -> (1, 1, H, W, T)."""
    cbv, n, H, W, T = x.shape
    assert cbv == 1 and n == 1, "PreConv rearrange requires cbv=1, n=1"

    # Linear op with no bias: mean over the 20 output channels is identical to
    # a single conv with the channel-averaged filter.
    w_mean = jnp.mean(weight.astype(jnp.float32), axis=(0, 1)).reshape(-1)  # (25,)

    # Keep the input layout: (H, W, T) with T on the lane axis (no transposes).
    imgs = x[0, 0].astype(jnp.float32)

    # Lane tiling along T: full T for small T, 128-lane tiles for large T so the
    # grid has multiple "parallel" steps (megacore on v7x) and lane-dense stores.
    LANE = 128
    if T >= LANE:
        Tb = LANE
        Tpad = -(-T // LANE) * LANE
    else:
        Tb = T
        Tpad = T
    grid_t = Tpad // Tb

    # 'same' zero-padding over the two non-lane dims (plus lane pad of T if any).
    imgs_pad = jnp.pad(imgs, ((PAD, PAD), (PAD, PAD), (0, Tpad - T)))

    out = pl.pallas_call(
        preconv_kernel,
        out_shape=jax.ShapeDtypeStruct((H, W, Tpad), jnp.float32),
        grid=(grid_t,),
        in_specs=[
            pl.BlockSpec(memory_space=pltpu.MemorySpace.SMEM),              # 25 weights
            pl.BlockSpec((H + 2 * PAD, W + 2 * PAD, Tb), lambda t: (0, 0, t)),
        ],
        out_specs=pl.BlockSpec((H, W, Tb), lambda t: (0, 0, t)),
        compiler_params=pltpu.CompilerParams(
            dimension_semantics=("parallel",),
            vmem_limit_bytes=32 * 1024 * 1024,   # safe on v7x (64 MiB) and v5e/v6e
        ),
    )(w_mean, imgs_pad)

    out = out[:, :, :T]           # drop lane padding, if any
    return out[None, None]        # (1, 1, H, W, T) -- already in output layout


def _reference(x, weight):
    """Pure-JAX reference of the PyTorch forward (unfused, 20 channels + mean)."""
    _, _, H, W, T = x.shape
    imgs = jnp.transpose(x[0, 0], (2, 0, 1))[:, None]  # (T, 1, H, W) NCHW
    conv = jax.lax.conv_general_dilated(
        imgs, weight, window_strides=(1, 1), padding="SAME",
        dimension_numbers=("NCHW", "OIHW", "NCHW"))      # (T, 20, H, W)
    mean_ch = conv.mean(axis=1)                           # (T, H, W)
    return jnp.transpose(mean_ch, (1, 2, 0))[None, None]  # (1, 1, H, W, T)


if __name__ == "__main__":
    key = jax.random.PRNGKey(0)
    kx, kw = jax.random.split(key)

    H, W, T = 16, 16, 8
    # Input matches the module's expected layout: (cbv=1, c*n=1, h, w, t).
    x = jax.random.normal(kx, (1, 1, H, W, T), dtype=jnp.float32)
    # Conv2d(1, 20, kernel_size=5, bias=False) weight, OIHW = (20, 1, 5, 5).
    weight = jax.random.normal(kw, (OC, 1, KH, KW), dtype=jnp.float32) * 0.1

    y = preconv_forward(x, weight)
    y = jax.block_until_ready(y)

    y_ref = jax.block_until_ready(_reference(x, weight))
    assert y.shape == (1, 1, H, W, T), y.shape
    np.testing.assert_allclose(np.asarray(y), np.asarray(y_ref),
                               rtol=1e-5, atol=1e-5)

    print("KERNEL_OK")
</pallas_src>

<mosaic_0001>
module attributes {stable_mosaic.version = 11 : i64} {
  func.func @preconv_kernel(%arg0: i32, %arg1: memref<25xf32, #tpu.memory_space<smem>>, %arg2: memref<20x20x8xf32, #tpu.memory_space<vmem>>, %arg3: memref<16x16x8xf32, #tpu.memory_space<vmem>>) attributes {dimension_semantics = [#tpu.dimension_semantics<parallel>], iteration_bounds = array<i64: 1>, scalar_prefetch = 0 : i64, scratch_operands = 0 : i64, tpu.core_type = #tpu.core_type<tc>, window_params = [{transform_indices = @transform_0, window_bounds = array<i64: 25>}, {transform_indices = @transform_1, window_bounds = array<i64: 20, 20, 8>}, {transform_indices = @transform_2, window_bounds = array<i64: 16, 16, 8>}]} {
    %c0 = arith.constant 0 : index
    %0 = memref.load %arg1[%c0] : memref<25xf32, #tpu.memory_space<smem>>
    %c1 = arith.constant 1 : index
    %1 = memref.load %arg1[%c1] : memref<25xf32, #tpu.memory_space<smem>>
    %c2 = arith.constant 2 : index
    %2 = memref.load %arg1[%c2] : memref<25xf32, #tpu.memory_space<smem>>
    %c3 = arith.constant 3 : index
    %3 = memref.load %arg1[%c3] : memref<25xf32, #tpu.memory_space<smem>>
    %c4 = arith.constant 4 : index
    %4 = memref.load %arg1[%c4] : memref<25xf32, #tpu.memory_space<smem>>
    %c5 = arith.constant 5 : index
    %5 = memref.load %arg1[%c5] : memref<25xf32, #tpu.memory_space<smem>>
    %c6 = arith.constant 6 : index
    %6 = memref.load %arg1[%c6] : memref<25xf32, #tpu.memory_space<smem>>
    %c7 = arith.constant 7 : index
    %7 = memref.load %arg1[%c7] : memref<25xf32, #tpu.memory_space<smem>>
    %c8 = arith.constant 8 : index
    %8 = memref.load %arg1[%c8] : memref<25xf32, #tpu.memory_space<smem>>
    %c9 = arith.constant 9 : index
    %9 = memref.load %arg1[%c9] : memref<25xf32, #tpu.memory_space<smem>>
    %c10 = arith.constant 10 : index
    %10 = memref.load %arg1[%c10] : memref<25xf32, #tpu.memory_space<smem>>
    %c11 = arith.constant 11 : index
    %11 = memref.load %arg1[%c11] : memref<25xf32, #tpu.memory_space<smem>>
    %c12 = arith.constant 12 : index
    %12 = memref.load %arg1[%c12] : memref<25xf32, #tpu.memory_space<smem>>
    %c13 = arith.constant 13 : index
    %13 = memref.load %arg1[%c13] : memref<25xf32, #tpu.memory_space<smem>>
    %c14 = arith.constant 14 : index
    %14 = memref.load %arg1[%c14] : memref<25xf32, #tpu.memory_space<smem>>
    %c15 = arith.constant 15 : index
    %15 = memref.load %arg1[%c15] : memref<25xf32, #tpu.memory_space<smem>>
    %c16 = arith.constant 16 : index
    %16 = memref.load %arg1[%c16] : memref<25xf32, #tpu.memory_space<smem>>
    %c17 = arith.constant 17 : index
    %17 = memref.load %arg1[%c17] : memref<25xf32, #tpu.memory_space<smem>>
    %c18 = arith.constant 18 : index
    %18 = memref.load %arg1[%c18] : memref<25xf32, #tpu.memory_space<smem>>
    %c19 = arith.constant 19 : index
    %19 = memref.load %arg1[%c19] : memref<25xf32, #tpu.memory_space<smem>>
    %c20 = arith.constant 20 : index
    %20 = memref.load %arg1[%c20] : memref<25xf32, #tpu.memory_space<smem>>
    %c21 = arith.constant 21 : index
    %21 = memref.load %arg1[%c21] : memref<25xf32, #tpu.memory_space<smem>>
    %c22 = arith.constant 22 : index
    %22 = memref.load %arg1[%c22] : memref<25xf32, #tpu.memory_space<smem>>
    %c23 = arith.constant 23 : index
    %23 = memref.load %arg1[%c23] : memref<25xf32, #tpu.memory_space<smem>>
    %c24 = arith.constant 24 : index
    %24 = memref.load %arg1[%c24] : memref<25xf32, #tpu.memory_space<smem>>
    %cst = arith.constant 0.000000e+00 : f32
    %25 = vector.broadcast %cst : f32 to vector<8x16x8xf32>
    %c0_0 = arith.constant 0 : index
    %c0_1 = arith.constant 0 : index
    %c0_2 = arith.constant 0 : index
    %26 = vector.load %arg2[%c0_0, %c0_1, %c0_2] : memref<20x20x8xf32, #tpu.memory_space<vmem>>, vector<8x16x8xf32>
    %27 = vector.broadcast %0 : f32 to vector<8x16x8xf32>
    %28 = arith.mulf %27, %26 : vector<8x16x8xf32>
    %29 = arith.addf %25, %28 : vector<8x16x8xf32>
    %c0_3 = arith.constant 0 : index
    %c1_4 = arith.constant 1 : index
    %c0_5 = arith.constant 0 : index
    %30 = vector.load %arg2[%c0_3, %c1_4, %c0_5] : memref<20x20x8xf32, #tpu.memory_space<vmem>>, vector<8x16x8xf32>
    %31 = vector.broadcast %1 : f32 to vector<8x16x8xf32>
    %32 = arith.mulf %31, %30 : vector<8x16x8xf32>
    %33 = arith.addf %29, %32 : vector<8x16x8xf32>
    %c0_6 = arith.constant 0 : index
    %c2_7 = arith.constant 2 : index
    %c0_8 = arith.constant 0 : index
    %34 = vector.load %arg2[%c0_6, %c2_7, %c0_8] : memref<20x20x8xf32, #tpu.memory_space<vmem>>, vector<8x16x8xf32>
    %35 = vector.broadcast %2 : f32 to vector<8x16x8xf32>
    %36 = arith.mulf %35, %34 : vector<8x16x8xf32>
    %37 = arith.addf %33, %36 : vector<8x16x8xf32>
    %c0_9 = arith.constant 0 : index
    %c3_10 = arith.constant 3 : index
    %c0_11 = arith.constant 0 : index
    %38 = vector.load %arg2[%c0_9, %c3_10, %c0_11] : memref<20x20x8xf32, #tpu.memory_space<vmem>>, vector<8x16x8xf32>
    %39 = vector.broadcast %3 : f32 to vector<8x16x8xf32>
    %40 = arith.mulf %39, %38 : vector<8x16x8xf32>
    %41 = arith.addf %37, %40 : vector<8x16x8xf32>
    %c0_12 = arith.constant 0 : index
    %c4_13 = arith.constant 4 : index
    %c0_14 = arith.constant 0 : index
    %42 = vector.load %arg2[%c0_12, %c4_13, %c0_14] : memref<20x20x8xf32, #tpu.memory_space<vmem>>, vector<8x16x8xf32>
    %43 = vector.broadcast %4 : f32 to vector<8x16x8xf32>
    %44 = arith.mulf %43, %42 : vector<8x16x8xf32>
    %45 = arith.addf %41, %44 : vector<8x16x8xf32>
    %c1_15 = arith.constant 1 : index
    %c0_16 = arith.constant 0 : index
    %c0_17 = arith.constant 0 : index
    %46 = vector.load %arg2[%c1_15, %c0_16, %c0_17] : memref<20x20x8xf32, #tpu.memory_space<vmem>>, vector<8x16x8xf32>
    %47 = vector.broadcast %5 : f32 to vector<8x16x8xf32>
    %48 = arith.mulf %47, %46 : vector<8x16x8xf32>
    %49 = arith.addf %45, %48 : vector<8x16x8xf32>
    %c1_18 = arith.constant 1 : index
    %c1_19 = arith.constant 1 : index
    %c0_20 = arith.constant 0 : index
    %50 = vector.load %arg2[%c1_18, %c1_19, %c0_20] : memref<20x20x8xf32, #tpu.memory_space<vmem>>, vector<8x16x8xf32>
    %51 = vector.broadcast %6 : f32 to vector<8x16x8xf32>
    %52 = arith.mulf %51, %50 : vector<8x16x8xf32>
    %53 = arith.addf %49, %52 : vector<8x16x8xf32>
    %c1_21 = arith.constant 1 : index
    %c2_22 = arith.constant 2 : index
    %c0_23 = arith.constant 0 : index
    %54 = vector.load %arg2[%c1_21, %c2_22, %c0_23] : memref<20x20x8xf32, #tpu.memory_space<vmem>>, vector<8x16x8xf32>
    %55 = vector.broadcast %7 : f32 to vector<8x16x8xf32>
    %56 = arith.mulf %55, %54 : vector<8x16x8xf32>
    %57 = arith.addf %53, %56 : vector<8x16x8xf32>
    %c1_24 = arith.constant 1 : index
    %c3_25 = arith.constant 3 : index
    %c0_26 = arith.constant 0 : index
    %58 = vector.load %arg2[%c1_24, %c3_25, %c0_26] : memref<20x20x8xf32, #tpu.memory_space<vmem>>, vector<8x16x8xf32>
    %59 = vector.broadcast %8 : f32 to vector<8x16x8xf32>
    %60 = arith.mulf %59, %58 : vector<8x16x8xf32>
    %61 = arith.addf %57, %60 : vector<8x16x8xf32>
    %c1_27 = arith.constant 1 : index
    %c4_28 = arith.constant 4 : index
    %c0_29 = arith.constant 0 : index
    %62 = vector.load %arg2[%c1_27, %c4_28, %c0_29] : memref<20x20x8xf32, #tpu.memory_space<vmem>>, vector<8x16x8xf32>
    %63 = vector.broadcast %9 : f32 to vector<8x16x8xf32>
    %64 = arith.mulf %63, %62 : vector<8x16x8xf32>
    %65 = arith.addf %61, %64 : vector<8x16x8xf32>
    %c2_30 = arith.constant 2 : index
    %c0_31 = arith.constant 0 : index
    %c0_32 = arith.constant 0 : index
    %66 = vector.load %arg2[%c2_30, %c0_31, %c0_32] : memref<20x20x8xf32, #tpu.memory_space<vmem>>, vector<8x16x8xf32>
    %67 = vector.broadcast %10 : f32 to vector<8x16x8xf32>
    %68 = arith.mulf %67, %66 : vector<8x16x8xf32>
    %69 = arith.addf %65, %68 : vector<8x16x8xf32>
    %c2_33 = arith.constant 2 : index
    %c1_34 = arith.constant 1 : index
    %c0_35 = arith.constant 0 : index
    %70 = vector.load %arg2[%c2_33, %c1_34, %c0_35] : memref<20x20x8xf32, #tpu.memory_space<vmem>>, vector<8x16x8xf32>
    %71 = vector.broadcast %11 : f32 to vector<8x16x8xf32>
    %72 = arith.mulf %71, %70 : vector<8x16x8xf32>
    %73 = arith.addf %69, %72 : vector<8x16x8xf32>
    %c2_36 = arith.constant 2 : index
    %c2_37 = arith.constant 2 : index
    %c0_38 = arith.constant 0 : index
    %74 = vector.load %arg2[%c2_36, %c2_37, %c0_38] : memref<20x20x8xf32, #tpu.memory_space<vmem>>, vector<8x16x8xf32>
    %75 = vector.broadcast %12 : f32 to vector<8x16x8xf32>
    %76 = arith.mulf %75, %74 : vector<8x16x8xf32>
    %77 = arith.addf %73, %76 : vector<8x16x8xf32>
    %c2_39 = arith.constant 2 : index
    %c3_40 = arith.constant 3 : index
    %c0_41 = arith.constant 0 : index
    %78 = vector.load %arg2[%c2_39, %c3_40, %c0_41] : memref<20x20x8xf32, #tpu.memory_space<vmem>>, vector<8x16x8xf32>
    %79 = vector.broadcast %13 : f32 to vector<8x16x8xf32>
    %80 = arith.mulf %79, %78 : vector<8x16x8xf32>
    %81 = arith.addf %77, %80 : vector<8x16x8xf32>
    %c2_42 = arith.constant 2 : index
    %c4_43 = arith.constant 4 : index
    %c0_44 = arith.constant 0 : index
    %82 = vector.load %arg2[%c2_42, %c4_43, %c0_44] : memref<20x20x8xf32, #tpu.memory_space<vmem>>, vector<8x16x8xf32>
    %83 = vector.broadcast %14 : f32 to vector<8x16x8xf32>
    %84 = arith.mulf %83, %82 : vector<8x16x8xf32>
    %85 = arith.addf %81, %84 : vector<8x16x8xf32>
    %c3_45 = arith.constant 3 : index
    %c0_46 = arith.constant 0 : index
    %c0_47 = arith.constant 0 : index
    %86 = vector.load %arg2[%c3_45, %c0_46, %c0_47] : memref<20x20x8xf32, #tpu.memory_space<vmem>>, vector<8x16x8xf32>
    %87 = vector.broadcast %15 : f32 to vector<8x16x8xf32>
    %88 = arith.mulf %87, %86 : vector<8x16x8xf32>
    %89 = arith.addf %85, %88 : vector<8x16x8xf32>
    %c3_48 = arith.constant 3 : index
    %c1_49 = arith.constant 1 : index
    %c0_50 = arith.constant 0 : index
    %90 = vector.load %arg2[%c3_48, %c1_49, %c0_50] : memref<20x20x8xf32, #tpu.memory_space<vmem>>, vector<8x16x8xf32>
    %91 = vector.broadcast %16 : f32 to vector<8x16x8xf32>
    %92 = arith.mulf %91, %90 : vector<8x16x8xf32>
    %93 = arith.addf %89, %92 : vector<8x16x8xf32>
    %c3_51 = arith.constant 3 : index
    %c2_52 = arith.constant 2 : index
    %c0_53 = arith.constant 0 : index
    %94 = vector.load %arg2[%c3_51, %c2_52, %c0_53] : memref<20x20x8xf32, #tpu.memory_space<vmem>>, vector<8x16x8xf32>
    %95 = vector.broadcast %17 : f32 to vector<8x16x8xf32>
    %96 = arith.mulf %95, %94 : vector<8x16x8xf32>
    %97 = arith.addf %93, %96 : vector<8x16x8xf32>
    %c3_54 = arith.constant 3 : index
    %c3_55 = arith.constant 3 : index
    %c0_56 = arith.constant 0 : index
    %98 = vector.load %arg2[%c3_54, %c3_55, %c0_56] : memref<20x20x8xf32, #tpu.memory_space<vmem>>, vector<8x16x8xf32>
    %99 = vector.broadcast %18 : f32 to vector<8x16x8xf32>
    %100 = arith.mulf %99, %98 : vector<8x16x8xf32>
    %101 = arith.addf %97, %100 : vector<8x16x8xf32>
    %c3_57 = arith.constant 3 : index
    %c4_58 = arith.constant 4 : index
    %c0_59 = arith.constant 0 : index
    %102 = vector.load %arg2[%c3_57, %c4_58, %c0_59] : memref<20x20x8xf32, #tpu.memory_space<vmem>>, vector<8x16x8xf32>
    %103 = vector.broadcast %19 : f32 to vector<8x16x8xf32>
    %104 = arith.mulf %103, %102 : vector<8x16x8xf32>
    %105 = arith.addf %101, %104 : vector<8x16x8xf32>
    %c4_60 = arith.constant 4 : index
    %c0_61 = arith.constant 0 : index
    %c0_62 = arith.constant 0 : index
    %106 = vector.load %arg2[%c4_60, %c0_61, %c0_62] : memref<20x20x8xf32, #tpu.memory_space<vmem>>, vector<8x16x8xf32>
    %107 = vector.broadcast %20 : f32 to vector<8x16x8xf32>
    %108 = arith.mulf %107, %106 : vector<8x16x8xf32>
    %109 = arith.addf %105, %108 : vector<8x16x8xf32>
    %c4_63 = arith.constant 4 : index
    %c1_64 = arith.constant 1 : index
    %c0_65 = arith.constant 0 : index
    %110 = vector.load %arg2[%c4_63, %c1_64, %c0_65] : memref<20x20x8xf32, #tpu.memory_space<vmem>>, vector<8x16x8xf32>
    %111 = vector.broadcast %21 : f32 to vector<8x16x8xf32>
    %112 = arith.mulf %111, %110 : vector<8x16x8xf32>
    %113 = arith.addf %109, %112 : vector<8x16x8xf32>
    %c4_66 = arith.constant 4 : index
    %c2_67 = arith.constant 2 : index
    %c0_68 = arith.constant 0 : index
    %114 = vector.load %arg2[%c4_66, %c2_67, %c0_68] : memref<20x20x8xf32, #tpu.memory_space<vmem>>, vector<8x16x8xf32>
    %115 = vector.broadcast %22 : f32 to vector<8x16x8xf32>
    %116 = arith.mulf %115, %114 : vector<8x16x8xf32>
    %117 = arith.addf %113, %116 : vector<8x16x8xf32>
    %c4_69 = arith.constant 4 : index
    %c3_70 = arith.constant 3 : index
    %c0_71 = arith.constant 0 : index
    %118 = vector.load %arg2[%c4_69, %c3_70, %c0_71] : memref<20x20x8xf32, #tpu.memory_space<vmem>>, vector<8x16x8xf32>
    %119 = vector.broadcast %23 : f32 to vector<8x16x8xf32>
    %120 = arith.mulf %119, %118 : vector<8x16x8xf32>
    %121 = arith.addf %117, %120 : vector<8x16x8xf32>
    %c4_72 = arith.constant 4 : index
    %c4_73 = arith.constant 4 : index
    %c0_74 = arith.constant 0 : index
    %122 = vector.load %arg2[%c4_72, %c4_73, %c0_74] : memref<20x20x8xf32, #tpu.memory_space<vmem>>, vector<8x16x8xf32>
    %123 = vector.broadcast %24 : f32 to vector<8x16x8xf32>
    %124 = arith.mulf %123, %122 : vector<8x16x8xf32>
    %125 = arith.addf %121, %124 : vector<8x16x8xf32>
    %c0_75 = arith.constant 0 : index
    %c0_76 = arith.constant 0 : index
    %c0_77 = arith.constant 0 : index
    %126 = vector.load %arg3[%c0_75, %c0_76, %c0_77] : memref<16x16x8xf32, #tpu.memory_space<vmem>>, vector<8x16x8xf32>
    tpu.vector_store %arg3[%c0_75, %c0_76, %c0_77], %125 {strides = array<i32>} : memref<16x16x8xf32, #tpu.memory_space<vmem>>, vector<8x16x8xf32>,
    %cst_78 = arith.constant 0.000000e+00 : f32
    %127 = vector.broadcast %cst_78 : f32 to vector<8x16x8xf32>
    %c8_79 = arith.constant 8 : index
    %c0_80 = arith.constant 0 : index
    %c0_81 = arith.constant 0 : index
    %128 = vector.load %arg2[%c8_79, %c0_80, %c0_81] : memref<20x20x8xf32, #tpu.memory_space<vmem>>, vector<8x16x8xf32>
    %129 = vector.broadcast %0 : f32 to vector<8x16x8xf32>
    %130 = arith.mulf %129, %128 : vector<8x16x8xf32>
    %131 = arith.addf %127, %130 : vector<8x16x8xf32>
    %c8_82 = arith.constant 8 : index
    %c1_83 = arith.constant 1 : index
    %c0_84 = arith.constant 0 : index
    %132 = vector.load %arg2[%c8_82, %c1_83, %c0_84] : memref<20x20x8xf32, #tpu.memory_space<vmem>>, vector<8x16x8xf32>
    %133 = vector.broadcast %1 : f32 to vector<8x16x8xf32>
    %134 = arith.mulf %133, %132 : vector<8x16x8xf32>
    %135 = arith.addf %131, %134 : vector<8x16x8xf32>
    %c8_85 = arith.constant 8 : index
    %c2_86 = arith.constant 2 : index
    %c0_87 = arith.constant 0 : index
    %136 = vector.load %arg2[%c8_85, %c2_86, %c0_87] : memref<20x20x8xf32, #tpu.memory_space<vmem>>, vector<8x16x8xf32>
    %137 = vector.broadcast %2 : f32 to vector<8x16x8xf32>
    %138 = arith.mulf %137, %136 : vector<8x16x8xf32>
    %139 = arith.addf %135, %138 : vector<8x16x8xf32>
    %c8_88 = arith.constant 8 : index
    %c3_89 = arith.constant 3 : index
    %c0_90 = arith.constant 0 : index
    %140 = vector.load %arg2[%c8_88, %c3_89, %c0_90] : memref<20x20x8xf32, #tpu.memory_space<vmem>>, vector<8x16x8xf32>
    %141 = vector.broadcast %3 : f32 to vector<8x16x8xf32>
    %142 = arith.mulf %141, %140 : vector<8x16x8xf32>
    %143 = arith.addf %139, %142 : vector<8x16x8xf32>
    %c8_91 = arith.constant 8 : index
    %c4_92 = arith.constant 4 : index
    %c0_93 = arith.constant 0 : index
    %144 = vector.load %arg2[%c8_91, %c4_92, %c0_93] : memref<20x20x8xf32, #tpu.memory_space<vmem>>, vector<8x16x8xf32>
    %145 = vector.broadcast %4 : f32 to vector<8x16x8xf32>
    %146 = arith.mulf %145, %144 : vector<8x16x8xf32>
    %147 = arith.addf %143, %146 : vector<8x16x8xf32>
    %c9_94 = arith.constant 9 : index
    %c0_95 = arith.constant 0 : index
    %c0_96 = arith.constant 0 : index
    %148 = vector.load %arg2[%c9_94, %c0_95, %c0_96] : memref<20x20x8xf32, #tpu.memory_space<vmem>>, vector<8x16x8xf32>
    %149 = vector.broadcast %5 : f32 to vector<8x16x8xf32>
    %150 = arith.mulf %149, %148 : vector<8x16x8xf32>
    %151 = arith.addf %147, %150 : vector<8x16x8xf32>
    %c9_97 = arith.constant 9 : index
    %c1_98 = arith.constant 1 : index
    %c0_99 = arith.constant 0 : index
    %152 = vector.load %arg2[%c9_97, %c1_98, %c0_99] : memref<20x20x8xf32, #tpu.memory_space<vmem>>, vector<8x16x8xf32>
    %153 = vector.broadcast %6 : f32 to vector<8x16x8xf32>
    %154 = arith.mulf %153, %152 : vector<8x16x8xf32>
    %155 = arith.addf %151, %154 : vector<8x16x8xf32>
    %c9_100 = arith.constant 9 : index
    %c2_101 = arith.constant 2 : index
    %c0_102 = arith.constant 0 : index
    %156 = vector.load %arg2[%c9_100, %c2_101, %c0_102] : memref<20x20x8xf32, #tpu.memory_space<vmem>>, vector<8x16x8xf32>
    %157 = vector.broadcast %7 : f32 to vector<8x16x8xf32>
    %158 = arith.mulf %157, %156 : vector<8x16x8xf32>
    %159 = arith.addf %155, %158 : vector<8x16x8xf32>
    %c9_103 = arith.constant 9 : index
    %c3_104 = arith.constant 3 : index
    %c0_105 = arith.constant 0 : index
    %160 = vector.load %arg2[%c9_103, %c3_104, %c0_105] : memref<20x20x8xf32, #tpu.memory_space<vmem>>, vector<8x16x8xf32>
    %161 = vector.broadcast %8 : f32 to vector<8x16x8xf32>
    %162 = arith.mulf %161, %160 : vector<8x16x8xf32>
    %163 = arith.addf %159, %162 : vector<8x16x8xf32>
    %c9_106 = arith.constant 9 : index
    %c4_107 = arith.constant 4 : index
    %c0_108 = arith.constant 0 : index
    %164 = vector.load %arg2[%c9_106, %c4_107, %c0_108] : memref<20x20x8xf32, #tpu.memory_space<vmem>>, vector<8x16x8xf32>
    %165 = vector.broadcast %9 : f32 to vector<8x16x8xf32>
    %166 = arith.mulf %165, %164 : vector<8x16x8xf32>
    %167 = arith.addf %163, %166 : vector<8x16x8xf32>
    %c10_109 = arith.constant 10 : index
    %c0_110 = arith.constant 0 : index
    %c0_111 = arith.constant 0 : index
    %168 = vector.load %arg2[%c10_109, %c0_110, %c0_111] : memref<20x20x8xf32, #tpu.memory_space<vmem>>, vector<8x16x8xf32>
    %169 = vector.broadcast %10 : f32 to vector<8x16x8xf32>
    %170 = arith.mulf %169, %168 : vector<8x16x8xf32>
    %171 = arith.addf %167, %170 : vector<8x16x8xf32>
    %c10_112 = arith.constant 10 : index
    %c1_113 = arith.constant 1 : index
    %c0_114 = arith.constant 0 : index
    %172 = vector.load %arg2[%c10_112, %c1_113, %c0_114] : memref<20x20x8xf32, #tpu.memory_space<vmem>>, vector<8x16x8xf32>
    %173 = vector.broadcast %11 : f32 to vector<8x16x8xf32>
    %174 = arith.mulf %173, %172 : vector<8x16x8xf32>
    %175 = arith.addf %171, %174 : vector<8x16x8xf32>
    %c10_115 = arith.constant 10 : index
    %c2_116 = arith.constant 2 : index
    %c0_117 = arith.constant 0 : index
    %176 = vector.load %arg2[%c10_115, %c2_116, %c0_117] : memref<20x20x8xf32, #tpu.memory_space<vmem>>, vector<8x16x8xf32>
    %177 = vector.broadcast %12 : f32 to vector<8x16x8xf32>
    %178 = arith.mulf %177, %176 : vector<8x16x8xf32>
    %179 = arith.addf %175, %178 : vector<8x16x8xf32>
    %c10_118 = arith.constant 10 : index
    %c3_119 = arith.constant 3 : index
    %c0_120 = arith.constant 0 : index
    %180 = vector.load %arg2[%c10_118, %c3_119, %c0_120] : memref<20x20x8xf32, #tpu.memory_space<vmem>>, vector<8x16x8xf32>
    %181 = vector.broadcast %13 : f32 to vector<8x16x8xf32>
    %182 = arith.mulf %181, %180 : vector<8x16x8xf32>
    %183 = arith.addf %179, %182 : vector<8x16x8xf32>
    %c10_121 = arith.constant 10 : index
    %c4_122 = arith.constant 4 : index
    %c0_123 = arith.constant 0 : index
    %184 = vector.load %arg2[%c10_121, %c4_122, %c0_123] : memref<20x20x8xf32, #tpu.memory_space<vmem>>, vector<8x16x8xf32>
    %185 = vector.broadcast %14 : f32 to vector<8x16x8xf32>
    %186 = arith.mulf %185, %184 : vector<8x16x8xf32>
    %187 = arith.addf %183, %186 : vector<8x16x8xf32>
    %c11_124 = arith.constant 11 : index
    %c0_125 = arith.constant 0 : index
    %c0_126 = arith.constant 0 : index
    %188 = vector.load %arg2[%c11_124, %c0_125, %c0_126] : memref<20x20x8xf32, #tpu.memory_space<vmem>>, vector<8x16x8xf32>
    %189 = vector.broadcast %15 : f32 to vector<8x16x8xf32>
    %190 = arith.mulf %189, %188 : vector<8x16x8xf32>
    %191 = arith.addf %187, %190 : vector<8x16x8xf32>
    %c11_127 = arith.constant 11 : index
    %c1_128 = arith.constant 1 : index
    %c0_129 = arith.constant 0 : index
    %192 = vector.load %arg2[%c11_127, %c1_128, %c0_129] : memref<20x20x8xf32, #tpu.memory_space<vmem>>, vector<8x16x8xf32>
    %193 = vector.broadcast %16 : f32 to vector<8x16x8xf32>
    %194 = arith.mulf %193, %192 : vector<8x16x8xf32>
    %195 = arith.addf %191, %194 : vector<8x16x8xf32>
    %c11_130 = arith.constant 11 : index
    %c2_131 = arith.constant 2 : index
    %c0_132 = arith.constant 0 : index
    %196 = vector.load %arg2[%c11_130, %c2_131, %c0_132] : memref<20x20x8xf32, #tpu.memory_space<vmem>>, vector<8x16x8xf32>
    %197 = vector.broadcast %17 : f32 to vector<8x16x8xf32>
    %198 = arith.mulf %197, %196 : vector<8x16x8xf32>
    %199 = arith.addf %195, %198 : vector<8x16x8xf32>
    %c11_133 = arith.constant 11 : index
    %c3_134 = arith.constant 3 : index
    %c0_135 = arith.constant 0 : index
    %200 = vector.load %arg2[%c11_133, %c3_134, %c0_135] : memref<20x20x8xf32, #tpu.memory_space<vmem>>, vector<8x16x8xf32>
    %201 = vector.broadcast %18 : f32 to vector<8x16x8xf32>
    %202 = arith.mulf %201, %200 : vector<8x16x8xf32>
    %203 = arith.addf %199, %202 : vector<8x16x8xf32>
    %c11_136 = arith.constant 11 : index
    %c4_137 = arith.constant 4 : index
    %c0_138 = arith.constant 0 : index
    %204 = vector.load %arg2[%c11_136, %c4_137, %c0_138] : memref<20x20x8xf32, #tpu.memory_space<vmem>>, vector<8x16x8xf32>
    %205 = vector.broadcast %19 : f32 to vector<8x16x8xf32>
    %206 = arith.mulf %205, %204 : vector<8x16x8xf32>
    %207 = arith.addf %203, %206 : vector<8x16x8xf32>
    %c12_139 = arith.constant 12 : index
    %c0_140 = arith.constant 0 : index
    %c0_141 = arith.constant 0 : index
    %208 = vector.load %arg2[%c12_139, %c0_140, %c0_141] : memref<20x20x8xf32, #tpu.memory_space<vmem>>, vector<8x16x8xf32>
    %209 = vector.broadcast %20 : f32 to vector<8x16x8xf32>
    %210 = arith.mulf %209, %208 : vector<8x16x8xf32>
    %211 = arith.addf %207, %210 : vector<8x16x8xf32>
    %c12_142 = arith.constant 12 : index
    %c1_143 = arith.constant 1 : index
    %c0_144 = arith.constant 0 : index
    %212 = vector.load %arg2[%c12_142, %c1_143, %c0_144] : memref<20x20x8xf32, #tpu.memory_space<vmem>>, vector<8x16x8xf32>
    %213 = vector.broadcast %21 : f32 to vector<8x16x8xf32>
    %214 = arith.mulf %213, %212 : vector<8x16x8xf32>
    %215 = arith.addf %211, %214 : vector<8x16x8xf32>
    %c12_145 = arith.constant 12 : index
    %c2_146 = arith.constant 2 : index
    %c0_147 = arith.constant 0 : index
    %216 = vector.load %arg2[%c12_145, %c2_146, %c0_147] : memref<20x20x8xf32, #tpu.memory_space<vmem>>, vector<8x16x8xf32>
    %217 = vector.broadcast %22 : f32 to vector<8x16x8xf32>
    %218 = arith.mulf %217, %216 : vector<8x16x8xf32>
    %219 = arith.addf %215, %218 : vector<8x16x8xf32>
    %c12_148 = arith.constant 12 : index
    %c3_149 = arith.constant 3 : index
    %c0_150 = arith.constant 0 : index
    %220 = vector.load %arg2[%c12_148, %c3_149, %c0_150] : memref<20x20x8xf32, #tpu.memory_space<vmem>>, vector<8x16x8xf32>
    %221 = vector.broadcast %23 : f32 to vector<8x16x8xf32>
    %222 = arith.mulf %221, %220 : vector<8x16x8xf32>
    %223 = arith.addf %219, %222 : vector<8x16x8xf32>
    %c12_151 = arith.constant 12 : index
    %c4_152 = arith.constant 4 : index
    %c0_153 = arith.constant 0 : index
    %224 = vector.load %arg2[%c12_151, %c4_152, %c0_153] : memref<20x20x8xf32, #tpu.memory_space<vmem>>, vector<8x16x8xf32>
    %225 = vector.broadcast %24 : f32 to vector<8x16x8xf32>
    %226 = arith.mulf %225, %224 : vector<8x16x8xf32>
    %227 = arith.addf %223, %226 : vector<8x16x8xf32>
    %c8_154 = arith.constant 8 : index
    %c0_155 = arith.constant 0 : index
    %c0_156 = arith.constant 0 : index
    %228 = vector.load %arg3[%c8_154, %c0_155, %c0_156] : memref<16x16x8xf32, #tpu.memory_space<vmem>>, vector<8x16x8xf32>
    tpu.vector_store %arg3[%c8_154, %c0_155, %c0_156], %227 {strides = array<i32>} : memref<16x16x8xf32, #tpu.memory_space<vmem>>, vector<8x16x8xf32>,
    return
  }
  func.func @transform_0(%arg0: i32) -> i32 {
    %c0_i32 = arith.constant 0 : i32
    %c0_i32_0 = arith.constant 0 : i32
    return %c0_i32 : i32
  }
  func.func @transform_1(%arg0: i32) -> (i32, i32, i32) {
    %c0_i32 = arith.constant 0 : i32
    %c0_i32_0 = arith.constant 0 : i32
    %c0_i32_1 = arith.constant 0 : i32
    return %c0_i32, %c0_i32_0, %arg0 : i32, i32, i32
  }
  func.func @transform_2(%arg0: i32) -> (i32, i32, i32) {
    %c0_i32 = arith.constant 0 : i32
    %c0_i32_0 = arith.constant 0 : i32
    %c0_i32_1 = arith.constant 0 : i32
    return %c0_i32, %c0_i32_0, %arg0 : i32, i32, i32
  }
}

</mosaic_0001>

<llo_original>
// kernel: preconv_forward.1
$region0: #{preconv_forward.1}
  #allocation0 [shape = 'u32[]', space=smem, size = 0x4, offset = 0x4, fixed_abs, tag = 'smem constant byte address 0x4 - core index']
  #allocation1 [shape = 'u32[144,128]{1,0:T(1,128)}', space=vmem, size = 0x12000, scoped, tag = 'internal scratch']
  %s0 = inlined_call_operand.vmem [shape: f32[25], index: 0, kind: input, shape index: {}]
  %s1 = inlined_call_operand.vmem [shape: f32[20,20,8], index: 1, kind: input, shape index: {}]
  %s2 = inlined_call_operand.vmem [shape: f32[16,16,8], index: 2, kind: output, shape index: {}]
  %s3 = sld [smem:[#allocation0]]
  $region22: #{preconv_forward.1} parent=0
    _
  %s5 = ssub.s32 1, %s3
  %s6 = scalar_select 0, %s5, %s3
  $region1: #{preconv_forward.1} parent=0
    #allocation2 [shape = 'u8[512]{0}', space=smem, size = 0x200, scoped, tag = 'input window, operand 0, single buffered']
    #allocation3 [shape = 's32[1]{0}', space=sflag, size = 0x4, scoped, tag = 'scoped memory for preconv_forward.1']
    %7 = vsyncpa [#allocation3], 0
    // Predicated region
    $region2: #{preconv_forward.1} parent=1 // pred_check
      _
    $region3: #{preconv_forward.1} parent=1 // pred_check_branch
      %9 = sbr.rel (0) target = $region5
    $region4: #{preconv_forward.1} parent=1 // pred_region
      %s11 = ssub.s32 16, 16
      %12 = vsyncadd [#allocation3], %s11
      %s14 = sshll.u32 %s0, 4
      %s15 = int_to_ptr.vmem [resolvable:$true] %s14
      %17 = dma.vmem_to_smem %s15, 16, [#allocation2], [#allocation3]
    $region5: #{preconv_forward.1} parent=1 // pred_fallthru
      _
    // Predicated region
    $region6: #{preconv_forward.1} parent=1 // pred_check
      _
    $region7: #{preconv_forward.1} parent=1 // pred_check_branch
      %19 = sbr.rel (0) target = $region9
    $region8: #{preconv_forward.1} parent=1 // pred_region
      _
    $region9: #{preconv_forward.1} parent=1 // pred_fallthru
      _
    // Predicated region
    $region10: #{preconv_forward.1} parent=1 // pred_check
      _
    $region11: #{preconv_forward.1} parent=1 // pred_check_branch
      %21 = sbr.rel (0) target = $region13
    $region12: #{preconv_forward.1} parent=1 // pred_region
      %22 = dma.done [#allocation3], 16
    $region13: #{preconv_forward.1} parent=1 // pred_fallthru
      _
    %23 = sfence
    %s24 = sld [smem:[#allocation2]]
    %s25 = sld [smem:[#allocation2 + $0x1]]
    %s26 = sld [smem:[#allocation2 + $0x2]]
    %s27 = sld [smem:[#allocation2 + $0x3]]
    %s28 = sld [smem:[#allocation2 + $0x4]]
    %s29 = sld [smem:[#allocation2 + $0x5]]
    %s30 = sld [smem:[#allocation2 + $0x6]]
    %s31 = sld [smem:[#allocation2 + $0x7]]
    %s32 = sld [smem:[#allocation2 + $0x8]]
    %s33 = sld [smem:[#allocation2 + $0x9]]
    %s34 = sld [smem:[#allocation2 + $0xa]]
    %s35 = sld [smem:[#allocation2 + $0xb]]
    %s36 = sld [smem:[#allocation2 + $0xc]]
    %s37 = sld [smem:[#allocation2 + $0xd]]
    %s38 = sld [smem:[#allocation2 + $0xe]]
    %s39 = sld [smem:[#allocation2 + $0xf]]
    %s40 = sld [smem:[#allocation2 + $0x10]]
    %s41 = sld [smem:[#allocation2 + $0x11]]
    %s42 = sld [smem:[#allocation2 + $0x12]]
    %s43 = sld [smem:[#allocation2 + $0x13]]
    %s44 = sld [smem:[#allocation2 + $0x14]]
    %s45 = sld [smem:[#allocation2 + $0x15]]
    %s46 = sld [smem:[#allocation2 + $0x16]]
    %s47 = sld [smem:[#allocation2 + $0x17]]
    %s48 = sld [smem:[#allocation2 + $0x18]]
    %v49 = vld [vmem:[%s1] sm:$0xff]
    %v50 = vld [vmem:[%s1 + $0x8] sm:$0xff]
    %v51 = vld [vmem:[%s1 + $0x18] sm:$0xff]
    %v52 = vld [vmem:[%s1 + $0x20] sm:$0xff]
    %v53 = vld [vmem:[%s1 + $0x30] sm:$0xff]
    %v54 = vld [vmem:[%s1 + $0x38] sm:$0xff]
    %v55 = vld [vmem:[%s1 + $0x48] sm:$0xff]
    %v56 = vld [vmem:[%s1 + $0x50] sm:$0xff]
    %v57 = vld [vmem:[%s1 + $0x60] sm:$0xff]
    %v58 = vld [vmem:[%s1 + $0x68] sm:$0xff]
    %v59 = vld [vmem:[%s1 + $0x78] sm:$0xff]
    %v60 = vld [vmem:[%s1 + $0x80] sm:$0xff]
    %v61 = vld [vmem:[%s1 + $0x90] sm:$0xff]
    %v62 = vld [vmem:[%s1 + $0x98] sm:$0xff]
    %v63 = vld [vmem:[%s1 + $0xa8] sm:$0xff]
    %v64 = vld [vmem:[%s1 + $0xb0] sm:$0xff]
    %v65 = vstv %s24
    %v66 = vmul.f32 %v65, %v49
    %v67 = vmul.f32 %v65, %v50
    %v68 = vmul.f32 %v65, %v51
    %v69 = vmul.f32 %v65, %v52
    %v70 = vmul.f32 %v65, %v53
    %v71 = vmul.f32 %v65, %v54
    %v72 = vmul.f32 %v65, %v55
    %v73 = vmul.f32 %v65, %v56
    %v74 = vmul.f32 %v65, %v57
    %v75 = vmul.f32 %v65, %v58
    %v76 = vmul.f32 %v65, %v59
    %v77 = vmul.f32 %v65, %v60
    %v78 = vmul.f32 %v65, %v61
    %v79 = vmul.f32 %v65, %v62
    %v80 = vmul.f32 %v65, %v63
    %v81 = vmul.f32 %v65, %v64
    %v82 = vadd.f32 %v66, 0.0
    %v83 = vadd.f32 %v67, 0.0
    %v84 = vadd.f32 %v68, 0.0
    %v85 = vadd.f32 %v69, 0.0
    %v86 = vadd.f32 %v70, 0.0
    %v87 = vadd.f32 %v71, 0.0
    %v88 = vadd.f32 %v72, 0.0
    %v89 = vadd.f32 %v73, 0.0
    %v90 = vadd.f32 %v74, 0.0
    %v91 = vadd.f32 %v75, 0.0
    %v92 = vadd.f32 %v76, 0.0
    %v93 = vadd.f32 %v77, 0.0
    %v94 = vadd.f32 %v78, 0.0
    %v95 = vadd.f32 %v79, 0.0
    %v96 = vadd.f32 %v80, 0.0
    %v97 = vadd.f32 %v81, 0.0
    %v98 = vld [vmem:[%s1 + $0x1] sm:$0xff]
    %v99 = vld [vmem:[%s1 + $0x9] sm:$0xff]
    %v100 = vld [vmem:[%s1 + $0x19] sm:$0xff]
    %v101 = vld [vmem:[%s1 + $0x21] sm:$0xff]
    %v102 = vld [vmem:[%s1 + $0x31] sm:$0xff]
    %v103 = vld [vmem:[%s1 + $0x39] sm:$0xff]
    %v104 = vld [vmem:[%s1 + $0x49] sm:$0xff]
    %v105 = vld [vmem:[%s1 + $0x51] sm:$0xff]
    %v106 = vld [vmem:[%s1 + $0x61] sm:$0xff]
    %v107 = vld [vmem:[%s1 + $0x69] sm:$0xff]
    %v108 = vld [vmem:[%s1 + $0x79] sm:$0xff]
    %v109 = vld [vmem:[%s1 + $0x81] sm:$0xff]
    %v110 = vld [vmem:[%s1 + $0x91] sm:$0xff]
    %v111 = vld [vmem:[%s1 + $0x99] sm:$0xff]
    %v112 = vld [vmem:[%s1 + $0xa9] sm:$0xff]
    %v113 = vld [vmem:[%s1 + $0xb1] sm:$0xff]
    %v114 = vstv %s25
    %v115 = vmul.f32 %v114, %v98
    %v116 = vmul.f32 %v114, %v99
    %v117 = vmul.f32 %v114, %v100
    %v118 = vmul.f32 %v114, %v101
    %v119 = vmul.f32 %v114, %v102
    %v120 = vmul.f32 %v114, %v103
    %v121 = vmul.f32 %v114, %v104
    %v122 = vmul.f32 %v114, %v105
    %v123 = vmul.f32 %v114, %v106
    %v124 = vmul.f32 %v114, %v107
    %v125 = vmul.f32 %v114, %v108
    %v126 = vmul.f32 %v114, %v109
    %v127 = vmul.f32 %v114, %v110
    %v128 = vmul.f32 %v114, %v111
    %v129 = vmul.f32 %v114, %v112
    %v130 = vmul.f32 %v114, %v113
    %v131 = vadd.f32 %v82, %v115
    %v132 = vadd.f32 %v83, %v116
    %v133 = vadd.f32 %v84, %v117
    %v134 = vadd.f32 %v85, %v118
    %v135 = vadd.f32 %v86, %v119
    %v136 = vadd.f32 %v87, %v120
    %v137 = vadd.f32 %v88, %v121
    %v138 = vadd.f32 %v89, %v122
    %v139 = vadd.f32 %v90, %v123
    %v140 = vadd.f32 %v91, %v124
    %v141 = vadd.f32 %v92, %v125
    %v142 = vadd.f32 %v93, %v126
    %v143 = vadd.f32 %v94, %v127
    %v144 = vadd.f32 %v95, %v128
    %v145 = vadd.f32 %v96, %v129
    %v146 = vadd.f32 %v97, %v130
    %v147 = vld [vmem:[%s1 + $0x2] sm:$0xff]
    %v148 = vld [vmem:[%s1 + $0xa] sm:$0xff]
    %v149 = vld [vmem:[%s1 + $0x1a] sm:$0xff]
    %v150 = vld [vmem:[%s1 + $0x22] sm:$0xff]
    %v151 = vld [vmem:[%s1 + $0x32] sm:$0xff]
    %v152 = vld [vmem:[%s1 + $0x3a] sm:$0xff]
    %v153 = vld [vmem:[%s1 + $0x4a] sm:$0xff]
    %v154 = vld [vmem:[%s1 + $0x52] sm:$0xff]
    %v155 = vld [vmem:[%s1 + $0x62] sm:$0xff]
    %v156 = vld [vmem:[%s1 + $0x6a] sm:$0xff]
    %v157 = vld [vmem:[%s1 + $0x7a] sm:$0xff]
    %v158 = vld [vmem:[%s1 + $0x82] sm:$0xff]
    %v159 = vld [vmem:[%s1 + $0x92] sm:$0xff]
    %v160 = vld [vmem:[%s1 + $0x9a] sm:$0xff]
    %v161 = vld [vmem:[%s1 + $0xaa] sm:$0xff]
    %v162 = vld [vmem:[%s1 + $0xb2] sm:$0xff]
    %v163 = vstv %s26
    %v164 = vmul.f32 %v163, %v147
    %v165 = vmul.f32 %v163, %v148
    %v166 = vmul.f32 %v163, %v149
    %v167 = vmul.f32 %v163, %v150
    %v168 = vmul.f32 %v163, %v151
    %v169 = vmul.f32 %v163, %v152
    %v170 = vmul.f32 %v163, %v153
    %v171 = vmul.f32 %v163, %v154
    %v172 = vmul.f32 %v163, %v155
    %v173 = vmul.f32 %v163, %v156
    %v174 = vmul.f32 %v163, %v157
    %v175 = vmul.f32 %v163, %v158
    %v176 = vmul.f32 %v163, %v159
    %v177 = vmul.f32 %v163, %v160
    %v178 = vmul.f32 %v163, %v161
    %v179 = vmul.f32 %v163, %v162
    %v180 = vadd.f32 %v131, %v164
    %v181 = vadd.f32 %v132, %v165
    %v182 = vadd.f32 %v133, %v166
    %v183 = vadd.f32 %v134, %v167
    %v184 = vadd.f32 %v135, %v168
    %v185 = vadd.f32 %v136, %v169
    %v186 = vadd.f32 %v137, %v170
    %v187 = vadd.f32 %v138, %v171
    %v188 = vadd.f32 %v139, %v172
    %v189 = vadd.f32 %v140, %v173
    %v190 = vadd.f32 %v141, %v174
    %v191 = vadd.f32 %v142, %v175
    %v192 = vadd.f32 %v143, %v176
    %v193 = vadd.f32 %v144, %v177
    %v194 = vadd.f32 %v145, %v178
    %v195 = vadd.f32 %v146, %v179
    %v196 = vld [vmem:[%s1 + $0x3] sm:$0xff]
    %v197 = vld [vmem:[%s1 + $0xb] sm:$0xff]
    %v198 = vld [vmem:[%s1 + $0x1b] sm:$0xff]
    %v199 = vld [vmem:[%s1 + $0x23] sm:$0xff]
    %v200 = vld [vmem:[%s1 + $0x33] sm:$0xff]
    %v201 = vld [vmem:[%s1 + $0x3b] sm:$0xff]
    %v202 = vld [vmem:[%s1 + $0x4b] sm:$0xff]
    %v203 = vld [vmem:[%s1 + $0x53] sm:$0xff]
    %v204 = vld [vmem:[%s1 + $0x63] sm:$0xff]
    %v205 = vld [vmem:[%s1 + $0x6b] sm:$0xff]
    %v206 = vld [vmem:[%s1 + $0x7b] sm:$0xff]
    %v207 = vld [vmem:[%s1 + $0x83] sm:$0xff]
    %v208 = vld [vmem:[%s1 + $0x93] sm:$0xff]
    %v209 = vld [vmem:[%s1 + $0x9b] sm:$0xff]
    %v210 = vld [vmem:[%s1 + $0xab] sm:$0xff]
    %v211 = vld [vmem:[%s1 + $0xb3] sm:$0xff]
    %v212 = vstv %s27
    %v213 = vmul.f32 %v212, %v196
    %v214 = vmul.f32 %v212, %v197
    %v215 = vmul.f32 %v212, %v198
    %v216 = vmul.f32 %v212, %v199
    %v217 = vmul.f32 %v212, %v200
    %v218 = vmul.f32 %v212, %v201
    %v219 = vmul.f32 %v212, %v202
    %v220 = vmul.f32 %v212, %v203
    %v221 = vmul.f32 %v212, %v204
    %v222 = vmul.f32 %v212, %v205
    %v223 = vmul.f32 %v212, %v206
    %v224 = vmul.f32 %v212, %v207
    %v225 = vmul.f32 %v212, %v208
    %v226 = vmul.f32 %v212, %v209
    %v227 = vmul.f32 %v212, %v210
    %v228 = vmul.f32 %v212, %v211
    %v229 = vadd.f32 %v180, %v213
    %v230 = vadd.f32 %v181, %v214
    %v231 = vadd.f32 %v182, %v215
    %v232 = vadd.f32 %v183, %v216
    %v233 = vadd.f32 %v184, %v217
    %v234 = vadd.f32 %v185, %v218
    %v235 = vadd.f32 %v186, %v219
    %v236 = vadd.f32 %v187, %v220
    %v237 = vadd.f32 %v188, %v221
    %v238 = vadd.f32 %v189, %v222
    %v239 = vadd.f32 %v190, %v223
    %v240 = vadd.f32 %v191, %v224
    %v241 = vadd.f32 %v192, %v225
    %v242 = vadd.f32 %v193, %v226
    %v243 = vadd.f32 %v194, %v227
    %v244 = vadd.f32 %v195, %v228
    %v245 = vld [vmem:[%s1 + $0x4] sm:$0xff]
    %v246 = vld [vmem:[%s1 + $0xc] sm:$0xff]
    %v247 = vld [vmem:[%s1 + $0x1c] sm:$0xff]
    %v248 = vld [vmem:[%s1 + $0x24] sm:$0xff]
    %v249 = vld [vmem:[%s1 + $0x34] sm:$0xff]
    %v250 = vld [vmem:[%s1 + $0x3c] sm:$0xff]
    %v251 = vld [vmem:[%s1 + $0x4c] sm:$0xff]
    %v252 = vld [vmem:[%s1 + $0x54] sm:$0xff]
    %v253 = vld [vmem:[%s1 + $0x64] sm:$0xff]
    %v254 = vld [vmem:[%s1 + $0x6c] sm:$0xff]
    %v255 = vld [vmem:[%s1 + $0x7c] sm:$0xff]
    %v256 = vld [vmem:[%s1 + $0x84] sm:$0xff]
    %v257 = vld [vmem:[%s1 + $0x94] sm:$0xff]
    %v258 = vld [vmem:[%s1 + $0x9c] sm:$0xff]
    %v259 = vld [vmem:[%s1 + $0xac] sm:$0xff]
    %v260 = vld [vmem:[%s1 + $0xb4] sm:$0xff]
    %v261 = vstv %s28
    %v262 = vmul.f32 %v261, %v245
    %v263 = vmul.f32 %v261, %v246
    %v264 = vmul.f32 %v261, %v247
    %v265 = vmul.f32 %v261, %v248
    %v266 = vmul.f32 %v261, %v249
    %v267 = vmul.f32 %v261, %v250
    %v268 = vmul.f32 %v261, %v251
    %v269 = vmul.f32 %v261, %v252
    %v270 = vmul.f32 %v261, %v253
    %v271 = vmul.f32 %v261, %v254
    %v272 = vmul.f32 %v261, %v255
    %v273 = vmul.f32 %v261, %v256
    %v274 = vmul.f32 %v261, %v257
    %v275 = vmul.f32 %v261, %v258
    %v276 = vmul.f32 %v261, %v259
    %v277 = vmul.f32 %v261, %v260
    %v278 = vadd.f32 %v229, %v262
    %v279 = vadd.f32 %v230, %v263
    %v280 = vadd.f32 %v231, %v264
    %v281 = vadd.f32 %v232, %v265
    %v282 = vadd.f32 %v233, %v266
    %v283 = vadd.f32 %v234, %v267
    %v284 = vadd.f32 %v235, %v268
    %v285 = vadd.f32 %v236, %v269
    %v286 = vadd.f32 %v237, %v270
    %v287 = vadd.f32 %v238, %v271
    %v288 = vadd.f32 %v239, %v272
    %v289 = vadd.f32 %v240, %v273
    %v290 = vadd.f32 %v241, %v274
    %v291 = vadd.f32 %v242, %v275
    %v292 = vadd.f32 %v243, %v276
    %v293 = vadd.f32 %v244, %v277
    %s294 = scalar_lea.vmem %s1, 24
    %v295 = vld [vmem:[%s294] sm:$0xff]
    %v296 = vld [vmem:[%s294 + $0x8] sm:$0xff]
    %v297 = vld [vmem:[%s294 + $0x18] sm:$0xff]
    %v298 = vld [vmem:[%s294 + $0x20] sm:$0xff]
    %v299 = vld [vmem:[%s294 + $0x30] sm:$0xff]
    %v300 = vld [vmem:[%s294 + $0x38] sm:$0xff]
    %v301 = vld [vmem:[%s294 + $0x48] sm:$0xff]
    %v302 = vld [vmem:[%s294 + $0x50] sm:$0xff]
    %v303 = vld [vmem:[%s294 + $0x60] sm:$0xff]
    %v304 = vld [vmem:[%s294 + $0x68] sm:$0xff]
    %v305 = vld [vmem:[%s294 + $0x78] sm:$0xff]
    %v306 = vld [vmem:[%s294 + $0x80] sm:$0xff]
    %v307 = vld [vmem:[%s294 + $0x90] sm:$0xff]
    %v308 = vld [vmem:[%s294 + $0x98] sm:$0xff]
    %v309 = vld [vmem:[%s294 + $0xa8] sm:$0xff]
    %v310 = vld [vmem:[%s294 + $0xb0] sm:$0xff]
    %v311 = vstv %s29
    %v312 = vmul.f32 %v311, %v295
    %v313 = vmul.f32 %v311, %v296
    %v314 = vmul.f32 %v311, %v297
    %v315 = vmul.f32 %v311, %v298
    %v316 = vmul.f32 %v311, %v299
    %v317 = vmul.f32 %v311, %v300
    %v318 = vmul.f32 %v311, %v301
    %v319 = vmul.f32 %v311, %v302
    %v320 = vmul.f32 %v311, %v303
    %v321 = vmul.f32 %v311, %v304
    %v322 = vmul.f32 %v311, %v305
    %v323 = vmul.f32 %v311, %v306
    %v324 = vmul.f32 %v311, %v307
    %v325 = vmul.f32 %v311, %v308
    %v326 = vmul.f32 %v311, %v309
    %v327 = vmul.f32 %v311, %v310
    %v328 = vadd.f32 %v278, %v312
    %v329 = vadd.f32 %v279, %v313
    %v330 = vadd.f32 %v280, %v314
    %v331 = vadd.f32 %v281, %v315
    %v332 = vadd.f32 %v282, %v316
    %v333 = vadd.f32 %v283, %v317
    %v334 = vadd.f32 %v284, %v318
    %v335 = vadd.f32 %v285, %v319
    %v336 = vadd.f32 %v286, %v320
    %v337 = vadd.f32 %v287, %v321
    %v338 = vadd.f32 %v288, %v322
    %v339 = vadd.f32 %v289, %v323
    %v340 = vadd.f32 %v290, %v324
    %v341 = vadd.f32 %v291, %v325
    %v342 = vadd.f32 %v292, %v326
    %v343 = vadd.f32 %v293, %v327
    %v344 = vld [vmem:[%s294 + $0x1] sm:$0xff]
    %v345 = vld [vmem:[%s294 + $0x9] sm:$0xff]
    %v346 = vld [vmem:[%s294 + $0x19] sm:$0xff]
    %v347 = vld [vmem:[%s294 + $0x21] sm:$0xff]
    %v348 = vld [vmem:[%s294 + $0x31] sm:$0xff]
    %v349 = vld [vmem:[%s294 + $0x39] sm:$0xff]
    %v350 = vld [vmem:[%s294 + $0x49] sm:$0xff]
    %v351 = vld [vmem:[%s294 + $0x51] sm:$0xff]
    %v352 = vld [vmem:[%s294 + $0x61] sm:$0xff]
    %v353 = vld [vmem:[%s294 + $0x69] sm:$0xff]
    %v354 = vld [vmem:[%s294 + $0x79] sm:$0xff]
    %v355 = vld [vmem:[%s294 + $0x81] sm:$0xff]
    %v356 = vld [vmem:[%s294 + $0x91] sm:$0xff]
    %v357 = vld [vmem:[%s294 + $0x99] sm:$0xff]
    %v358 = vld [vmem:[%s294 + $0xa9] sm:$0xff]
    %v359 = vld [vmem:[%s294 + $0xb1] sm:$0xff]
    %v360 = vstv %s30
    %v361 = vmul.f32 %v360, %v344
    %v362 = vmul.f32 %v360, %v345
    %v363 = vmul.f32 %v360, %v346
    %v364 = vmul.f32 %v360, %v347
    %v365 = vmul.f32 %v360, %v348
    %v366 = vmul.f32 %v360, %v349
    %v367 = vmul.f32 %v360, %v350
    %v368 = vmul.f32 %v360, %v351
    %v369 = vmul.f32 %v360, %v352
    %v370 = vmul.f32 %v360, %v353
    %v371 = vmul.f32 %v360, %v354
    %v372 = vmul.f32 %v360, %v355
    %v373 = vmul.f32 %v360, %v356
    %v374 = vmul.f32 %v360, %v357
    %v375 = vmul.f32 %v360, %v358
    %v376 = vmul.f32 %v360, %v359
    %v377 = vadd.f32 %v328, %v361
    %v378 = vadd.f32 %v329, %v362
    %v379 = vadd.f32 %v330, %v363
    %v380 = vadd.f32 %v331, %v364
    %v381 = vadd.f32 %v332, %v365
    %v382 = vadd.f32 %v333, %v366
    %v383 = vadd.f32 %v334, %v367
    %v384 = vadd.f32 %v335, %v368
    %v385 = vadd.f32 %v336, %v369
    %v386 = vadd.f32 %v337, %v370
    %v387 = vadd.f32 %v338, %v371
    %v388 = vadd.f32 %v339, %v372
    %v389 = vadd.f32 %v340, %v373
    %v390 = vadd.f32 %v341, %v374
    %v391 = vadd.f32 %v342, %v375
    %v392 = vadd.f32 %v343, %v376
    %v393 = vld [vmem:[%s294 + $0x2] sm:$0xff]
    %v394 = vld [vmem:[%s294 + $0xa] sm:$0xff]
    %v395 = vld [vmem:[%s294 + $0x1a] sm:$0xff]
    %v396 = vld [vmem:[%s294 + $0x22] sm:$0xff]
    %v397 = vld [vmem:[%s294 + $0x32] sm:$0xff]
    %v398 = vld [vmem:[%s294 + $0x3a] sm:$0xff]
    %v399 = vld [vmem:[%s294 + $0x4a] sm:$0xff]
    %v400 = vld [vmem:[%s294 + $0x52] sm:$0xff]
    %v401 = vld [vmem:[%s294 + $0x62] sm:$0xff]
    %v402 = vld [vmem:[%s294 + $0x6a] sm:$0xff]
    %v403 = vld [vmem:[%s294 + $0x7a] sm:$0xff]
    %v404 = vld [vmem:[%s294 + $0x82] sm:$0xff]
    %v405 = vld [vmem:[%s294 + $0x92] sm:$0xff]
    %v406 = vld [vmem:[%s294 + $0x9a] sm:$0xff]
    %v407 = vld [vmem:[%s294 + $0xaa] sm:$0xff]
    %v408 = vld [vmem:[%s294 + $0xb2] sm:$0xff]
    %v409 = vstv %s31
    %v410 = vmul.f32 %v409, %v393
    %v411 = vmul.f32 %v409, %v394
    %v412 = vmul.f32 %v409, %v395
    %v413 = vmul.f32 %v409, %v396
    %v414 = vmul.f32 %v409, %v397
    %v415 = vmul.f32 %v409, %v398
    %v416 = vmul.f32 %v409, %v399
    %v417 = vmul.f32 %v409, %v400
    %v418 = vmul.f32 %v409, %v401
    %v419 = vmul.f32 %v409, %v402
    %v420 = vmul.f32 %v409, %v403
    %v421 = vmul.f32 %v409, %v404
    %v422 = vmul.f32 %v409, %v405
    %v423 = vmul.f32 %v409, %v406
    %v424 = vmul.f32 %v409, %v407
    %v425 = vmul.f32 %v409, %v408
    %v426 = vadd.f32 %v377, %v410
    %v427 = vadd.f32 %v378, %v411
    %v428 = vadd.f32 %v379, %v412
    %v429 = vadd.f32 %v380, %v413
    %v430 = vadd.f32 %v381, %v414
    %v431 = vadd.f32 %v382, %v415
    %v432 = vadd.f32 %v383, %v416
    %v433 = vadd.f32 %v384, %v417
    %v434 = vadd.f32 %v385, %v418
    %v435 = vadd.f32 %v386, %v419
    %v436 = vadd.f32 %v387, %v420
    %v437 = vadd.f32 %v388, %v421
    %v438 = vadd.f32 %v389, %v422
    %v439 = vadd.f32 %v390, %v423
    %v440 = vadd.f32 %v391, %v424
    %v441 = vadd.f32 %v392, %v425
    %v442 = vld [vmem:[%s294 + $0x3] sm:$0xff]
    %v443 = vld [vmem:[%s294 + $0xb] sm:$0xff]
    %v444 = vld [vmem:[%s294 + $0x1b] sm:$0xff]
    %v445 = vld [vmem:[%s294 + $0x23] sm:$0xff]
    %v446 = vld [vmem:[%s294 + $0x33] sm:$0xff]
    %v447 = vld [vmem:[%s294 + $0x3b] sm:$0xff]
    %v448 = vld [vmem:[%s294 + $0x4b] sm:$0xff]
    %v449 = vld [vmem:[%s294 + $0x53] sm:$0xff]
    %v450 = vld [vmem:[%s294 + $0x63] sm:$0xff]
    %v451 = vld [vmem:[%s294 + $0x6b] sm:$0xff]
    %v452 = vld [vmem:[%s294 + $0x7b] sm:$0xff]
    %v453 = vld [vmem:[%s294 + $0x83] sm:$0xff]
    %v454 = vld [vmem:[%s294 + $0x93] sm:$0xff]
    %v455 = vld [vmem:[%s294 + $0x9b] sm:$0xff]
    %v456 = vld [vmem:[%s294 + $0xab] sm:$0xff]
    %v457 = vld [vmem:[%s294 + $0xb3] sm:$0xff]
    %v458 = vstv %s32
    %v459 = vmul.f32 %v458, %v442
    %v460 = vmul.f32 %v458, %v443
    %v461 = vmul.f32 %v458, %v444
    %v462 = vmul.f32 %v458, %v445
    %v463 = vmul.f32 %v458, %v446
    %v464 = vmul.f32 %v458, %v447
    %v465 = vmul.f32 %v458, %v448
    %v466 = vmul.f32 %v458, %v449
    %v467 = vmul.f32 %v458, %v450
    %v468 = vmul.f32 %v458, %v451
    %v469 = vmul.f32 %v458, %v452
    %v470 = vmul.f32 %v458, %v453
    %v471 = vmul.f32 %v458, %v454
    %v472 = vmul.f32 %v458, %v455
    %v473 = vmul.f32 %v458, %v456
    %v474 = vmul.f32 %v458, %v457
    %v475 = vadd.f32 %v426, %v459
    %v476 = vadd.f32 %v427, %v460
    %v477 = vadd.f32 %v428, %v461
    %v478 = vadd.f32 %v429, %v462
    %v479 = vadd.f32 %v430, %v463
    %v480 = vadd.f32 %v431, %v464
    %v481 = vadd.f32 %v432, %v465
    %v482 = vadd.f32 %v433, %v466
    %v483 = vadd.f32 %v434, %v467
    %v484 = vadd.f32 %v435, %v468
    %v485 = vadd.f32 %v436, %v469
    %v486 = vadd.f32 %v437, %v470
    %v487 = vadd.f32 %v438, %v471
    %v488 = vadd.f32 %v439, %v472
    %v489 = vadd.f32 %v440, %v473
    %v490 = vadd.f32 %v441, %v474
    %v491 = vld [vmem:[%s294 + $0x4] sm:$0xff]
    %v492 = vld [vmem:[%s294 + $0xc] sm:$0xff]
    %v493 = vld [vmem:[%s294 + $0x1c] sm:$0xff]
    %v494 = vld [vmem:[%s294 + $0x24] sm:$0xff]
    %v495 = vld [vmem:[%s294 + $0x34] sm:$0xff]
    %v496 = vld [vmem:[%s294 + $0x3c] sm:$0xff]
    %v497 = vld [vmem:[%s294 + $0x4c] sm:$0xff]
    %v498 = vld [vmem:[%s294 + $0x54] sm:$0xff]
    %v499 = vld [vmem:[%s294 + $0x64] sm:$0xff]
    %v500 = vld [vmem:[%s294 + $0x6c] sm:$0xff]
    %v501 = vld [vmem:[%s294 + $0x7c] sm:$0xff]
    %v502 = vld [vmem:[%s294 + $0x84] sm:$0xff]
    %v503 = vld [vmem:[%s294 + $0x94] sm:$0xff]
    %v504 = vld [vmem:[%s294 + $0x9c] sm:$0xff]
    %v505 = vld [vmem:[%s294 + $0xac] sm:$0xff]
    %v506 = vld [vmem:[%s294 + $0xb4] sm:$0xff]
    %v507 = vstv %s33
    %v508 = vmul.f32 %v507, %v491
    %v509 = vmul.f32 %v507, %v492
    %v510 = vmul.f32 %v507, %v493
    %v511 = vmul.f32 %v507, %v494
    %v512 = vmul.f32 %v507, %v495
    %v513 = vmul.f32 %v507, %v496
    %v514 = vmul.f32 %v507, %v497
    %v515 = vmul.f32 %v507, %v498
    %v516 = vmul.f32 %v507, %v499
    %v517 = vmul.f32 %v507, %v500
    %v518 = vmul.f32 %v507, %v501
    %v519 = vmul.f32 %v507, %v502
    %v520 = vmul.f32 %v507, %v503
    %v521 = vmul.f32 %v507, %v504
    %v522 = vmul.f32 %v507, %v505
    %v523 = vmul.f32 %v507, %v506
    %v524 = vadd.f32 %v475, %v508
    %v525 = vadd.f32 %v476, %v509
    %v526 = vadd.f32 %v477, %v510
    %v527 = vadd.f32 %v478, %v511
    %v528 = vadd.f32 %v479, %v512
    %v529 = vadd.f32 %v480, %v513
    %v530 = vadd.f32 %v481, %v514
    %v531 = vadd.f32 %v482, %v515
    %v532 = vadd.f32 %v483, %v516
    %v533 = vadd.f32 %v484, %v517
    %v534 = vadd.f32 %v485, %v518
    %v535 = vadd.f32 %v486, %v519
    %v536 = vadd.f32 %v487, %v520
    %v537 = vadd.f32 %v488, %v521
    %v538 = vadd.f32 %v489, %v522
    %v539 = vadd.f32 %v490, %v523
    %s540 = scalar_lea.vmem %s1, 48
    %v541 = vld [vmem:[%s540] sm:$0xff]
    %v542 = vld [vmem:[%s540 + $0x8] sm:$0xff]
    %v543 = vld [vmem:[%s540 + $0x18] sm:$0xff]
    %v544 = vld [vmem:[%s540 + $0x20] sm:$0xff]
    %v545 = vld [vmem:[%s540 + $0x30] sm:$0xff]
    %v546 = vld [vmem:[%s540 + $0x38] sm:$0xff]
    %v547 = vld [vmem:[%s540 + $0x48] sm:$0xff]
    %v548 = vld [vmem:[%s540 + $0x50] sm:$0xff]
    %v549 = vld [vmem:[%s540 + $0x60] sm:$0xff]
    %v550 = vld [vmem:[%s540 + $0x68] sm:$0xff]
    %v551 = vld [vmem:[%s540 + $0x78] sm:$0xff]
    %v552 = vld [vmem:[%s540 + $0x80] sm:$0xff]
    %v553 = vld [vmem:[%s540 + $0x90] sm:$0xff]
    %v554 = vld [vmem:[%s540 + $0x98] sm:$0xff]
    %v555 = vld [vmem:[%s540 + $0xa8] sm:$0xff]
    %v556 = vld [vmem:[%s540 + $0xb0] sm:$0xff]
    %v557 = vstv %s34
    %v558 = vmul.f32 %v557, %v541
    %v559 = vmul.f32 %v557, %v542
    %v560 = vmul.f32 %v557, %v543
    %v561 = vmul.f32 %v557, %v544
    %v562 = vmul.f32 %v557, %v545
    %v563 = vmul.f32 %v557, %v546
    %v564 = vmul.f32 %v557, %v547
    %v565 = vmul.f32 %v557, %v548
    %v566 = vmul.f32 %v557, %v549
    %v567 = vmul.f32 %v557, %v550
    %v568 = vmul.f32 %v557, %v551
    %v569 = vmul.f32 %v557, %v552
    %v570 = vmul.f32 %v557, %v553
    %v571 = vmul.f32 %v557, %v554
    %v572 = vmul.f32 %v557, %v555
    %v573 = vmul.f32 %v557, %v556
    %v574 = vadd.f32 %v524, %v558
    %v575 = vadd.f32 %v525, %v559
    %v576 = vadd.f32 %v526, %v560
    %v577 = vadd.f32 %v527, %v561
    %v578 = vadd.f32 %v528, %v562
    %v579 = vadd.f32 %v529, %v563
    %v580 = vadd.f32 %v530, %v564
    %v581 = vadd.f32 %v531, %v565
    %v582 = vadd.f32 %v532, %v566
    %v583 = vadd.f32 %v533, %v567
    %v584 = vadd.f32 %v534, %v568
    %v585 = vadd.f32 %v535, %v569
    %v586 = vadd.f32 %v536, %v570
    %v587 = vadd.f32 %v537, %v571
    %v588 = vadd.f32 %v538, %v572
    %v589 = vadd.f32 %v539, %v573
    %v590 = vld [vmem:[%s540 + $0x1] sm:$0xff]
    %v591 = vld [vmem:[%s540 + $0x9] sm:$0xff]
    %v592 = vld [vmem:[%s540 + $0x19] sm:$0xff]
    %v593 = vld [vmem:[%s540 + $0x21] sm:$0xff]
    %v594 = vld [vmem:[%s540 + $0x31] sm:$0xff]
    %v595 = vld [vmem:[%s540 + $0x39] sm:$0xff]
    %v596 = vld [vmem:[%s540 + $0x49] sm:$0xff]
    %v597 = vld [vmem:[%s540 + $0x51] sm:$0xff]
    %v598 = vld [vmem:[%s540 + $0x61] sm:$0xff]
    %v599 = vld [vmem:[%s540 + $0x69] sm:$0xff]
    %v600 = vld [vmem:[%s540 + $0x79] sm:$0xff]
    %v601 = vld [vmem:[%s540 + $0x81] sm:$0xff]
    %v602 = vld [vmem:[%s540 + $0x91] sm:$0xff]
    %v603 = vld [vmem:[%s540 + $0x99] sm:$0xff]
    %v604 = vld [vmem:[%s540 + $0xa9] sm:$0xff]
    %v605 = vld [vmem:[%s540 + $0xb1] sm:$0xff]
    %v606 = vstv %s35
    %v607 = vmul.f32 %v606, %v590
    %v608 = vmul.f32 %v606, %v591
    %v609 = vmul.f32 %v606, %v592
    %v610 = vmul.f32 %v606, %v593
    %v611 = vmul.f32 %v606, %v594
    %v612 = vmul.f32 %v606, %v595
    %v613 = vmul.f32 %v606, %v596
    %v614 = vmul.f32 %v606, %v597
    %v615 = vmul.f32 %v606, %v598
    %v616 = vmul.f32 %v606, %v599
    %v617 = vmul.f32 %v606, %v600
    %v618 = vmul.f32 %v606, %v601
    %v619 = vmul.f32 %v606, %v602
    %v620 = vmul.f32 %v606, %v603
    %v621 = vmul.f32 %v606, %v604
    %v622 = vmul.f32 %v606, %v605
    %v623 = vadd.f32 %v574, %v607
    %v624 = vadd.f32 %v575, %v608
    %v625 = vadd.f32 %v576, %v609
    %v626 = vadd.f32 %v577, %v610
    %v627 = vadd.f32 %v578, %v611
    %v628 = vadd.f32 %v579, %v612
    %v629 = vadd.f32 %v580, %v613
    %v630 = vadd.f32 %v581, %v614
    %v631 = vadd.f32 %v582, %v615
    %v632 = vadd.f32 %v583, %v616
    %v633 = vadd.f32 %v584, %v617
    %v634 = vadd.f32 %v585, %v618
    %v635 = vadd.f32 %v586, %v619
    %v636 = vadd.f32 %v587, %v620
    %v637 = vadd.f32 %v588, %v621
    %v638 = vadd.f32 %v589, %v622
    %v639 = vld [vmem:[%s540 + $0x2] sm:$0xff]
    %v640 = vld [vmem:[%s540 + $0xa] sm:$0xff]
    %v641 = vld [vmem:[%s540 + $0x1a] sm:$0xff]
    %v642 = vld [vmem:[%s540 + $0x22] sm:$0xff]
    %v643 = vld [vmem:[%s540 + $0x32] sm:$0xff]
    %v644 = vld [vmem:[%s540 + $0x3a] sm:$0xff]
    %v645 = vld [vmem:[%s540 + $0x4a] sm:$0xff]
    %v646 = vld [vmem:[%s540 + $0x52] sm:$0xff]
    %v647 = vld [vmem:[%s540 + $0x62] sm:$0xff]
    %v648 = vld [vmem:[%s540 + $0x6a] sm:$0xff]
    %v649 = vld [vmem:[%s540 + $0x7a] sm:$0xff]
    %v650 = vld [vmem:[%s540 + $0x82] sm:$0xff]
    %v651 = vld [vmem:[%s540 + $0x92] sm:$0xff]
    %v652 = vld [vmem:[%s540 + $0x9a] sm:$0xff]
    %v653 = vld [vmem:[%s540 + $0xaa] sm:$0xff]
    %v654 = vld [vmem:[%s540 + $0xb2] sm:$0xff]
    %v655 = vstv %s36
    %v656 = vmul.f32 %v655, %v639
    %v657 = vmul.f32 %v655, %v640
    %v658 = vmul.f32 %v655, %v641
    %v659 = vmul.f32 %v655, %v642
    %v660 = vmul.f32 %v655, %v643
    %v661 = vmul.f32 %v655, %v644
    %v662 = vmul.f32 %v655, %v645
    %v663 = vmul.f32 %v655, %v646
    %v664 = vmul.f32 %v655, %v647
    %v665 = vmul.f32 %v655, %v648
    %v666 = vmul.f32 %v655, %v649
    %v667 = vmul.f32 %v655, %v650
    %v668 = vmul.f32 %v655, %v651
    %v669 = vmul.f32 %v655, %v652
    %v670 = vmul.f32 %v655, %v653
    %v671 = vmul.f32 %v655, %v654
    %v672 = vadd.f32 %v623, %v656
    %v673 = vadd.f32 %v624, %v657
    %v674 = vadd.f32 %v625, %v658
    %v675 = vadd.f32 %v626, %v659
    %v676 = vadd.f32 %v627, %v660
    %v677 = vadd.f32 %v628, %v661
    %v678 = vadd.f32 %v629, %v662
    %v679 = vadd.f32 %v630, %v663
    %v680 = vadd.f32 %v631, %v664
    %v681 = vadd.f32 %v632, %v665
    %v682 = vadd.f32 %v633, %v666
    %v683 = vadd.f32 %v634, %v667
    %v684 = vadd.f32 %v635, %v668
    %v685 = vadd.f32 %v636, %v669
    %v686 = vadd.f32 %v637, %v670
    %v687 = vadd.f32 %v638, %v671
    %v688 = vld [vmem:[%s540 + $0x3] sm:$0xff]
    %v689 = vld [vmem:[%s540 + $0xb] sm:$0xff]
    %v690 = vld [vmem:[%s540 + $0x1b] sm:$0xff]
    %v691 = vld [vmem:[%s540 + $0x23] sm:$0xff]
    %v692 = vld [vmem:[%s540 + $0x33] sm:$0xff]
    %v693 = vld [vmem:[%s540 + $0x3b] sm:$0xff]
    %v694 = vld [vmem:[%s540 + $0x4b] sm:$0xff]
    %v695 = vld [vmem:[%s540 + $0x53] sm:$0xff]
    %v696 = vld [vmem:[%s540 + $0x63] sm:$0xff]
    %v697 = vld [vmem:[%s540 + $0x6b] sm:$0xff]
    %v698 = vld [vmem:[%s540 + $0x7b] sm:$0xff]
    %v699 = vld [vmem:[%s540 + $0x83] sm:$0xff]
    %v700 = vld [vmem:[%s540 + $0x93] sm:$0xff]
    %v701 = vld [vmem:[%s540 + $0x9b] sm:$0xff]
    %v702 = vld [vmem:[%s540 + $0xab] sm:$0xff]
    %v703 = vld [vmem:[%s540 + $0xb3] sm:$0xff]
    %v704 = vstv %s37
    %v705 = vmul.f32 %v704, %v688
    %v706 = vmul.f32 %v704, %v689
    %v707 = vmul.f32 %v704, %v690
    %v708 = vmul.f32 %v704, %v691
    %v709 = vmul.f32 %v704, %v692
    %v710 = vmul.f32 %v704, %v693
    %v711 = vmul.f32 %v704, %v694
    %v712 = vmul.f32 %v704, %v695
    %v713 = vmul.f32 %v704, %v696
    %v714 = vmul.f32 %v704, %v697
    %v715 = vmul.f32 %v704, %v698
    %v716 = vmul.f32 %v704, %v699
    %v717 = vmul.f32 %v704, %v700
    %v718 = vmul.f32 %v704, %v701
    %v719 = vmul.f32 %v704, %v702
    %v720 = vmul.f32 %v704, %v703
    %v721 = vadd.f32 %v672, %v705
    %v722 = vadd.f32 %v673, %v706
    %v723 = vadd.f32 %v674, %v707
    %v724 = vadd.f32 %v675, %v708
    %v725 = vadd.f32 %v676, %v709
    %v726 = vadd.f32 %v677, %v710
    %v727 = vadd.f32 %v678, %v711
    %v728 = vadd.f32 %v679, %v712
    %v729 = vadd.f32 %v680, %v713
    %v730 = vadd.f32 %v681, %v714
    %v731 = vadd.f32 %v682, %v715
    %v732 = vadd.f32 %v683, %v716
    %v733 = vadd.f32 %v684, %v717
    %v734 = vadd.f32 %v685, %v718
    %v735 = vadd.f32 %v686, %v719
    %v736 = vadd.f32 %v687, %v720
    %v737 = vld [vmem:[%s540 + $0x4] sm:$0xff]
    %v738 = vld [vmem:[%s540 + $0xc] sm:$0xff]
    %v739 = vld [vmem:[%s540 + $0x1c] sm:$0xff]
    %v740 = vld [vmem:[%s540 + $0x24] sm:$0xff]
    %v741 = vld [vmem:[%s540 + $0x34] sm:$0xff]
    %v742 = vld [vmem:[%s540 + $0x3c] sm:$0xff]
    %v743 = vld [vmem:[%s540 + $0x4c] sm:$0xff]
    %v744 = vld [vmem:[%s540 + $0x54] sm:$0xff]
    %v745 = vld [vmem:[%s540 + $0x64] sm:$0xff]
    %v746 = vld [vmem:[%s540 + $0x6c] sm:$0xff]
    %v747 = vld [vmem:[%s540 + $0x7c] sm:$0xff]
    %v748 = vld [vmem:[%s540 + $0x84] sm:$0xff]
    %v749 = vld [vmem:[%s540 + $0x94] sm:$0xff]
    %v750 = vld [vmem:[%s540 + $0x9c] sm:$0xff]
    %v751 = vld [vmem:[%s540 + $0xac] sm:$0xff]
    %v752 = vld [vmem:[%s540 + $0xb4] sm:$0xff]
    %v753 = vstv %s38
    %v754 = vmul.f32 %v753, %v737
    %v755 = vmul.f32 %v753, %v738
    %v756 = vmul.f32 %v753, %v739
    %v757 = vmul.f32 %v753, %v740
    %v758 = vmul.f32 %v753, %v741
    %v759 = vmul.f32 %v753, %v742
    %v760 = vmul.f32 %v753, %v743
    %v761 = vmul.f32 %v753, %v744
    %v762 = vmul.f32 %v753, %v745
    %v763 = vmul.f32 %v753, %v746
    %v764 = vmul.f32 %v753, %v747
    %v765 = vmul.f32 %v753, %v748
    %v766 = vmul.f32 %v753, %v749
    %v767 = vmul.f32 %v753, %v750
    %v768 = vmul.f32 %v753, %v751
    %v769 = vmul.f32 %v753, %v752
    %v770 = vadd.f32 %v721, %v754
    %v771 = vadd.f32 %v722, %v755
    %v772 = vadd.f32 %v723, %v756
    %v773 = vadd.f32 %v724, %v757
    %v774 = vadd.f32 %v725, %v758
    %v775 = vadd.f32 %v726, %v759
    %v776 = vadd.f32 %v727, %v760
    %v777 = vadd.f32 %v728, %v761
    %v778 = vadd.f32 %v729, %v762
    %v779 = vadd.f32 %v730, %v763
    %v780 = vadd.f32 %v731, %v764
    %v781 = vadd.f32 %v732, %v765
    %v782 = vadd.f32 %v733, %v766
    %v783 = vadd.f32 %v734, %v767
    %v784 = vadd.f32 %v735, %v768
    %v785 = vadd.f32 %v736, %v769
    %s786 = scalar_lea.vmem %s1, 72
    %v787 = vld [vmem:[%s786] sm:$0xff]
    %v788 = vld [vmem:[%s786 + $0x8] sm:$0xff]
    %v789 = vld [vmem:[%s786 + $0x18] sm:$0xff]
    %v790 = vld [vmem:[%s786 + $0x20] sm:$0xff]
    %v791 = vld [vmem:[%s786 + $0x30] sm:$0xff]
    %v792 = vld [vmem:[%s786 + $0x38] sm:$0xff]
    %v793 = vld [vmem:[%s786 + $0x48] sm:$0xff]
    %v794 = vld [vmem:[%s786 + $0x50] sm:$0xff]
    %v795 = vld [vmem:[%s786 + $0x60] sm:$0xff]
    %v796 = vld [vmem:[%s786 + $0x68] sm:$0xff]
    %v797 = vld [vmem:[%s786 + $0x78] sm:$0xff]
    %v798 = vld [vmem:[%s786 + $0x80] sm:$0xff]
    %v799 = vld [vmem:[%s786 + $0x90] sm:$0xff]
    %v800 = vld [vmem:[%s786 + $0x98] sm:$0xff]
    %v801 = vld [vmem:[%s786 + $0xa8] sm:$0xff]
    %v802 = vld [vmem:[%s786 + $0xb0] sm:$0xff]
    %v803 = vstv %s39
    %v804 = vmul.f32 %v803, %v787
    %v805 = vmul.f32 %v803, %v788
    %v806 = vmul.f32 %v803, %v789
    %v807 = vmul.f32 %v803, %v790
    %v808 = vmul.f32 %v803, %v791
    %v809 = vmul.f32 %v803, %v792
    %v810 = vmul.f32 %v803, %v793
    %v811 = vmul.f32 %v803, %v794
    %v812 = vmul.f32 %v803, %v795
    %v813 = vmul.f32 %v803, %v796
    %v814 = vmul.f32 %v803, %v797
    %v815 = vmul.f32 %v803, %v798
    %v816 = vmul.f32 %v803, %v799
    %v817 = vmul.f32 %v803, %v800
    %v818 = vmul.f32 %v803, %v801
    %v819 = vmul.f32 %v803, %v802
    %v820 = vadd.f32 %v770, %v804
    %v821 = vadd.f32 %v771, %v805
    %v822 = vadd.f32 %v772, %v806
    %v823 = vadd.f32 %v773, %v807
    %v824 = vadd.f32 %v774, %v808
    %v825 = vadd.f32 %v775, %v809
    %v826 = vadd.f32 %v776, %v810
    %v827 = vadd.f32 %v777, %v811
    %v828 = vadd.f32 %v778, %v812
    %v829 = vadd.f32 %v779, %v813
    %v830 = vadd.f32 %v780, %v814
    %v831 = vadd.f32 %v781, %v815
    %v832 = vadd.f32 %v782, %v816
    %v833 = vadd.f32 %v783, %v817
    %v834 = vadd.f32 %v784, %v818
    %v835 = vadd.f32 %v785, %v819
    %v836 = vld [vmem:[%s786 + $0x1] sm:$0xff]
    %v837 = vld [vmem:[%s786 + $0x9] sm:$0xff]
    %v838 = vld [vmem:[%s786 + $0x19] sm:$0xff]
    %v839 = vld [vmem:[%s786 + $0x21] sm:$0xff]
    %v840 = vld [vmem:[%s786 + $0x31] sm:$0xff]
    %v841 = vld [vmem:[%s786 + $0x39] sm:$0xff]
    %v842 = vld [vmem:[%s786 + $0x49] sm:$0xff]
    %v843 = vld [vmem:[%s786 + $0x51] sm:$0xff]
    %v844 = vld [vmem:[%s786 + $0x61] sm:$0xff]
    %v845 = vld [vmem:[%s786 + $0x69] sm:$0xff]
    %v846 = vld [vmem:[%s786 + $0x79] sm:$0xff]
    %v847 = vld [vmem:[%s786 + $0x81] sm:$0xff]
    %v848 = vld [vmem:[%s786 + $0x91] sm:$0xff]
    %v849 = vld [vmem:[%s786 + $0x99] sm:$0xff]
    %v850 = vld [vmem:[%s786 + $0xa9] sm:$0xff]
    %v851 = vld [vmem:[%s786 + $0xb1] sm:$0xff]
    %v852 = vstv %s40
    %v853 = vmul.f32 %v852, %v836
    %v854 = vmul.f32 %v852, %v837
    %v855 = vmul.f32 %v852, %v838
    %v856 = vmul.f32 %v852, %v839
    %v857 = vmul.f32 %v852, %v840
    %v858 = vmul.f32 %v852, %v841
    %v859 = vmul.f32 %v852, %v842
    %v860 = vmul.f32 %v852, %v843
    %v861 = vmul.f32 %v852, %v844
    %v862 = vmul.f32 %v852, %v845
    %v863 = vmul.f32 %v852, %v846
    %v864 = vmul.f32 %v852, %v847
    %v865 = vmul.f32 %v852, %v848
    %v866 = vmul.f32 %v852, %v849
    %v867 = vmul.f32 %v852, %v850
    %v868 = vmul.f32 %v852, %v851
    %v869 = vadd.f32 %v820, %v853
    %v870 = vadd.f32 %v821, %v854
    %v871 = vadd.f32 %v822, %v855
    %v872 = vadd.f32 %v823, %v856
    %v873 = vadd.f32 %v824, %v857
    %v874 = vadd.f32 %v825, %v858
    %v875 = vadd.f32 %v826, %v859
    %v876 = vadd.f32 %v827, %v860
    %v877 = vadd.f32 %v828, %v861
    %v878 = vadd.f32 %v829, %v862
    %v879 = vadd.f32 %v830, %v863
    %v880 = vadd.f32 %v831, %v864
    %v881 = vadd.f32 %v832, %v865
    %v882 = vadd.f32 %v833, %v866
    %v883 = vadd.f32 %v834, %v867
    %v884 = vadd.f32 %v835, %v868
    %v885 = vld [vmem:[%s786 + $0x2] sm:$0xff]
    %v886 = vld [vmem:[%s786 + $0xa] sm:$0xff]
    %v887 = vld [vmem:[%s786 + $0x1a] sm:$0xff]
    %v888 = vld [vmem:[%s786 + $0x22] sm:$0xff]
    %v889 = vld [vmem:[%s786 + $0x32] sm:$0xff]
    %v890 = vld [vmem:[%s786 + $0x3a] sm:$0xff]
    %v891 = vld [vmem:[%s786 + $0x4a] sm:$0xff]
    %v892 = vld [vmem:[%s786 + $0x52] sm:$0xff]
    %v893 = vld [vmem:[%s786 + $0x62] sm:$0xff]
    %v894 = vld [vmem:[%s786 + $0x6a] sm:$0xff]
    %v895 = vld [vmem:[%s786 + $0x7a] sm:$0xff]
    %v896 = vld [vmem:[%s786 + $0x82] sm:$0xff]
    %v897 = vld [vmem:[%s786 + $0x92] sm:$0xff]
    %v898 = vld [vmem:[%s786 + $0x9a] sm:$0xff]
    %v899 = vld [vmem:[%s786 + $0xaa] sm:$0xff]
    %v900 = vld [vmem:[%s786 + $0xb2] sm:$0xff]
    %v901 = vstv %s41
    %v902 = vmul.f32 %v901, %v885
    %v903 = vmul.f32 %v901, %v886
    %v904 = vmul.f32 %v901, %v887
    %v905 = vmul.f32 %v901, %v888
    %v906 = vmul.f32 %v901, %v889
    %v907 = vmul.f32 %v901, %v890
    %v908 = vmul.f32 %v901, %v891
    %v909 = vmul.f32 %v901, %v892
    %v910 = vmul.f32 %v901, %v893
    %v911 = vmul.f32 %v901, %v894
    %v912 = vmul.f32 %v901, %v895
    %v913 = vmul.f32 %v901, %v896
    %v914 = vmul.f32 %v901, %v897
    %v915 = vmul.f32 %v901, %v898
    %v916 = vmul.f32 %v901, %v899
    %v917 = vmul.f32 %v901, %v900
    %v918 = vadd.f32 %v869, %v902
    %v919 = vadd.f32 %v870, %v903
    %v920 = vadd.f32 %v871, %v904
    %v921 = vadd.f32 %v872, %v905
    %v922 = vadd.f32 %v873, %v906
    %v923 = vadd.f32 %v874, %v907
    %v924 = vadd.f32 %v875, %v908
    %v925 = vadd.f32 %v876, %v909
    %v926 = vadd.f32 %v877, %v910
    %v927 = vadd.f32 %v878, %v911
    %v928 = vadd.f32 %v879, %v912
    %v929 = vadd.f32 %v880, %v913
    %v930 = vadd.f32 %v881, %v914
    %v931 = vadd.f32 %v882, %v915
    %v932 = vadd.f32 %v883, %v916
    %v933 = vadd.f32 %v884, %v917
    %v934 = vld [vmem:[%s786 + $0x3] sm:$0xff]
    %v935 = vld [vmem:[%s786 + $0xb] sm:$0xff]
    %v936 = vld [vmem:[%s786 + $0x1b] sm:$0xff]
    %v937 = vld [vmem:[%s786 + $0x23] sm:$0xff]
    %v938 = vld [vmem:[%s786 + $0x33] sm:$0xff]
    %v939 = vld [vmem:[%s786 + $0x3b] sm:$0xff]
    %v940 = vld [vmem:[%s786 + $0x4b] sm:$0xff]
    %v941 = vld [vmem:[%s786 + $0x53] sm:$0xff]
    %v942 = vld [vmem:[%s786 + $0x63] sm:$0xff]
    %v943 = vld [vmem:[%s786 + $0x6b] sm:$0xff]
    %v944 = vld [vmem:[%s786 + $0x7b] sm:$0xff]
    %v945 = vld [vmem:[%s786 + $0x83] sm:$0xff]
    %v946 = vld [vmem:[%s786 + $0x93] sm:$0xff]
    %v947 = vld [vmem:[%s786 + $0x9b] sm:$0xff]
    %v948 = vld [vmem:[%s786 + $0xab] sm:$0xff]
    %v949 = vld [vmem:[%s786 + $0xb3] sm:$0xff]
    %v950 = vstv %s42
    %v951 = vmul.f32 %v950, %v934
    %v952 = vmul.f32 %v950, %v935
    %v953 = vmul.f32 %v950, %v936
    %v954 = vmul.f32 %v950, %v937
    %v955 = vmul.f32 %v950, %v938
    %v956 = vmul.f32 %v950, %v939
    %v957 = vmul.f32 %v950, %v940
    %v958 = vmul.f32 %v950, %v941
    %v959 = vmul.f32 %v950, %v942
    %v960 = vmul.f32 %v950, %v943
    %v961 = vmul.f32 %v950, %v944
    %v962 = vmul.f32 %v950, %v945
    %v963 = vmul.f32 %v950, %v946
    %v964 = vmul.f32 %v950, %v947
    %v965 = vmul.f32 %v950, %v948
    %v966 = vmul.f32 %v950, %v949
    %v967 = vadd.f32 %v918, %v951
    %v968 = vadd.f32 %v919, %v952
    %v969 = vadd.f32 %v920, %v953
    %v970 = vadd.f32 %v921, %v954
    %v971 = vadd.f32 %v922, %v955
    %v972 = vadd.f32 %v923, %v956
    %v973 = vadd.f32 %v924, %v957
    %v974 = vadd.f32 %v925, %v958
    %v975 = vadd.f32 %v926, %v959
    %v976 = vadd.f32 %v927, %v960
    %v977 = vadd.f32 %v928, %v961
    %v978 = vadd.f32 %v929, %v962
    %v979 = vadd.f32 %v930, %v963
    %v980 = vadd.f32 %v931, %v964
    %v981 = vadd.f32 %v932, %v965
    %v982 = vadd.f32 %v933, %v966
    %v983 = vld [vmem:[%s786 + $0x4] sm:$0xff]
    %v984 = vld [vmem:[%s786 + $0xc] sm:$0xff]
    %v985 = vld [vmem:[%s786 + $0x1c] sm:$0xff]
    %v986 = vld [vmem:[%s786 + $0x24] sm:$0xff]
    %v987 = vld [vmem:[%s786 + $0x34] sm:$0xff]
    %v988 = vld [vmem:[%s786 + $0x3c] sm:$0xff]
    %v989 = vld [vmem:[%s786 + $0x4c] sm:$0xff]
    %v990 = vld [vmem:[%s786 + $0x54] sm:$0xff]
    %v991 = vld [vmem:[%s786 + $0x64] sm:$0xff]
    %v992 = vld [vmem:[%s786 + $0x6c] sm:$0xff]
    %v993 = vld [vmem:[%s786 + $0x7c] sm:$0xff]
    %v994 = vld [vmem:[%s786 + $0x84] sm:$0xff]
    %v995 = vld [vmem:[%s786 + $0x94] sm:$0xff]
    %v996 = vld [vmem:[%s786 + $0x9c] sm:$0xff]
    %v997 = vld [vmem:[%s786 + $0xac] sm:$0xff]
    %v998 = vld [vmem:[%s786 + $0xb4] sm:$0xff]
    %v999 = vstv %s43
    %v1000 = vmul.f32 %v999, %v983
    %v1001 = vmul.f32 %v999, %v984
    %v1002 = vmul.f32 %v999, %v985
    %v1003 = vmul.f32 %v999, %v986
    %v1004 = vmul.f32 %v999, %v987
    %v1005 = vmul.f32 %v999, %v988
    %v1006 = vmul.f32 %v999, %v989
    %v1007 = vmul.f32 %v999, %v990
    %v1008 = vmul.f32 %v999, %v991
    %v1009 = vmul.f32 %v999, %v992
    %v1010 = vmul.f32 %v999, %v993
    %v1011 = vmul.f32 %v999, %v994
    %v1012 = vmul.f32 %v999, %v995
    %v1013 = vmul.f32 %v999, %v996
    %v1014 = vmul.f32 %v999, %v997
    %v1015 = vmul.f32 %v999, %v998
    %v1016 = vadd.f32 %v967, %v1000
    %v1017 = vadd.f32 %v968, %v1001
    %v1018 = vadd.f32 %v969, %v1002
    %v1019 = vadd.f32 %v970, %v1003
    %v1020 = vadd.f32 %v971, %v1004
    %v1021 = vadd.f32 %v972, %v1005
    %v1022 = vadd.f32 %v973, %v1006
    %v1023 = vadd.f32 %v974, %v1007
    %v1024 = vadd.f32 %v975, %v1008
    %v1025 = vadd.f32 %v976, %v1009
    %v1026 = vadd.f32 %v977, %v1010
    %v1027 = vadd.f32 %v978, %v1011
    %v1028 = vadd.f32 %v979, %v1012
    %v1029 = vadd.f32 %v980, %v1013
    %v1030 = vadd.f32 %v981, %v1014
    %v1031 = vadd.f32 %v982, %v1015
    %s1032 = scalar_lea.vmem %s1, 96
    %v1033 = vld [vmem:[%s1032] sm:$0xff]
    %v1034 = vld [vmem:[%s1032 + $0x8] sm:$0xff]
    %v1035 = vld [vmem:[%s1032 + $0x18] sm:$0xff]
    %v1036 = vld [vmem:[%s1032 + $0x20] sm:$0xff]
    %v1037 = vld [vmem:[%s1032 + $0x30] sm:$0xff]
    %v1038 = vld [vmem:[%s1032 + $0x38] sm:$0xff]
    %v1039 = vld [vmem:[%s1032 + $0x48] sm:$0xff]
    %v1040 = vld [vmem:[%s1032 + $0x50] sm:$0xff]
    %v1041 = vld [vmem:[%s1032 + $0x60] sm:$0xff]
    %v1042 = vld [vmem:[%s1032 + $0x68] sm:$0xff]
    %v1043 = vld [vmem:[%s1032 + $0x78] sm:$0xff]
    %v1044 = vld [vmem:[%s1032 + $0x80] sm:$0xff]
    %v1045 = vld [vmem:[%s1032 + $0x90] sm:$0xff]
    %v1046 = vld [vmem:[%s1032 + $0x98] sm:$0xff]
    %v1047 = vld [vmem:[%s1032 + $0xa8] sm:$0xff]
    %v1048 = vld [vmem:[%s1032 + $0xb0] sm:$0xff]
    %v1049 = vstv %s44
    %v1050 = vmul.f32 %v1049, %v1033
    %v1051 = vmul.f32 %v1049, %v1034
    %v1052 = vmul.f32 %v1049, %v1035
    %v1053 = vmul.f32 %v1049, %v1036
    %v1054 = vmul.f32 %v1049, %v1037
    %v1055 = vmul.f32 %v1049, %v1038
    %v1056 = vmul.f32 %v1049, %v1039
    %v1057 = vmul.f32 %v1049, %v1040
    %v1058 = vmul.f32 %v1049, %v1041
    %v1059 = vmul.f32 %v1049, %v1042
    %v1060 = vmul.f32 %v1049, %v1043
    %v1061 = vmul.f32 %v1049, %v1044
    %v1062 = vmul.f32 %v1049, %v1045
    %v1063 = vmul.f32 %v1049, %v1046
    %v1064 = vmul.f32 %v1049, %v1047
    %v1065 = vmul.f32 %v1049, %v1048
    %v1066 = vadd.f32 %v1016, %v1050
    %v1067 = vadd.f32 %v1017, %v1051
    %v1068 = vadd.f32 %v1018, %v1052
    %v1069 = vadd.f32 %v1019, %v1053
    %v1070 = vadd.f32 %v1020, %v1054
    %v1071 = vadd.f32 %v1021, %v1055
    %v1072 = vadd.f32 %v1022, %v1056
    %v1073 = vadd.f32 %v1023, %v1057
    %v1074 = vadd.f32 %v1024, %v1058
    %v1075 = vadd.f32 %v1025, %v1059
    %v1076 = vadd.f32 %v1026, %v1060
    %v1077 = vadd.f32 %v1027, %v1061
    %v1078 = vadd.f32 %v1028, %v1062
    %v1079 = vadd.f32 %v1029, %v1063
    %v1080 = vadd.f32 %v1030, %v1064
    %v1081 = vadd.f32 %v1031, %v1065
    %v1082 = vld [vmem:[%s1032 + $0x1] sm:$0xff]
    %v1083 = vld [vmem:[%s1032 + $0x9] sm:$0xff]
    %v1084 = vld [vmem:[%s1032 + $0x19] sm:$0xff]
    %v1085 = vld [vmem:[%s1032 + $0x21] sm:$0xff]
    %v1086 = vld [vmem:[%s1032 + $0x31] sm:$0xff]
    %v1087 = vld [vmem:[%s1032 + $0x39] sm:$0xff]
    %v1088 = vld [vmem:[%s1032 + $0x49] sm:$0xff]
    %v1089 = vld [vmem:[%s1032 + $0x51] sm:$0xff]
    %v1090 = vld [vmem:[%s1032 + $0x61] sm:$0xff]
    %v1091 = vld [vmem:[%s1032 + $0x69] sm:$0xff]
    %v1092 = vld [vmem:[%s1032 + $0x79] sm:$0xff]
    %v1093 = vld [vmem:[%s1032 + $0x81] sm:$0xff]
    %v1094 = vld [vmem:[%s1032 + $0x91] sm:$0xff]
    %v1095 = vld [vmem:[%s1032 + $0x99] sm:$0xff]
    %v1096 = vld [vmem:[%s1032 + $0xa9] sm:$0xff]
    %v1097 = vld [vmem:[%s1032 + $0xb1] sm:$0xff]
    %v1098 = vstv %s45
    %v1099 = vmul.f32 %v1098, %v1082
    %v1100 = vmul.f32 %v1098, %v1083
    %v1101 = vmul.f32 %v1098, %v1084
    %v1102 = vmul.f32 %v1098, %v1085
    %v1103 = vmul.f32 %v1098, %v1086
    %v1104 = vmul.f32 %v1098, %v1087
    %v1105 = vmul.f32 %v1098, %v1088
    %v1106 = vmul.f32 %v1098, %v1089
    %v1107 = vmul.f32 %v1098, %v1090
    %v1108 = vmul.f32 %v1098, %v1091
    %v1109 = vmul.f32 %v1098, %v1092
    %v1110 = vmul.f32 %v1098, %v1093
    %v1111 = vmul.f32 %v1098, %v1094
    %v1112 = vmul.f32 %v1098, %v1095
    %v1113 = vmul.f32 %v1098, %v1096
    %v1114 = vmul.f32 %v1098, %v1097
    %v1115 = vadd.f32 %v1066, %v1099
    %v1116 = vadd.f32 %v1067, %v1100
    %v1117 = vadd.f32 %v1068, %v1101
    %v1118 = vadd.f32 %v1069, %v1102
    %v1119 = vadd.f32 %v1070, %v1103
    %v1120 = vadd.f32 %v1071, %v1104
    %v1121 = vadd.f32 %v1072, %v1105
    %v1122 = vadd.f32 %v1073, %v1106
    %v1123 = vadd.f32 %v1074, %v1107
    %v1124 = vadd.f32 %v1075, %v1108
    %v1125 = vadd.f32 %v1076, %v1109
    %v1126 = vadd.f32 %v1077, %v1110
    %v1127 = vadd.f32 %v1078, %v1111
    %v1128 = vadd.f32 %v1079, %v1112
    %v1129 = vadd.f32 %v1080, %v1113
    %v1130 = vadd.f32 %v1081, %v1114
    %v1131 = vld [vmem:[%s1032 + $0x2] sm:$0xff]
    %v1132 = vld [vmem:[%s1032 + $0xa] sm:$0xff]
    %v1133 = vld [vmem:[%s1032 + $0x1a] sm:$0xff]
    %v1134 = vld [vmem:[%s1032 + $0x22] sm:$0xff]
    %v1135 = vld [vmem:[%s1032 + $0x32] sm:$0xff]
    %v1136 = vld [vmem:[%s1032 + $0x3a] sm:$0xff]
    %v1137 = vld [vmem:[%s1032 + $0x4a] sm:$0xff]
    %v1138 = vld [vmem:[%s1032 + $0x52] sm:$0xff]
    %v1139 = vld [vmem:[%s1032 + $0x62] sm:$0xff]
    %v1140 = vld [vmem:[%s1032 + $0x6a] sm:$0xff]
    %v1141 = vld [vmem:[%s1032 + $0x7a] sm:$0xff]
    %v1142 = vld [vmem:[%s1032 + $0x82] sm:$0xff]
    %v1143 = vld [vmem:[%s1032 + $0x92] sm:$0xff]
    %v1144 = vld [vmem:[%s1032 + $0x9a] sm:$0xff]
    %v1145 = vld [vmem:[%s1032 + $0xaa] sm:$0xff]
    %v1146 = vld [vmem:[%s1032 + $0xb2] sm:$0xff]
    %v1147 = vstv %s46
    %v1148 = vmul.f32 %v1147, %v1131
    %v1149 = vmul.f32 %v1147, %v1132
    %v1150 = vmul.f32 %v1147, %v1133
    %v1151 = vmul.f32 %v1147, %v1134
    %v1152 = vmul.f32 %v1147, %v1135
    %v1153 = vmul.f32 %v1147, %v1136
    %v1154 = vmul.f32 %v1147, %v1137
    %v1155 = vmul.f32 %v1147, %v1138
    %v1156 = vmul.f32 %v1147, %v1139
    %v1157 = vmul.f32 %v1147, %v1140
    %v1158 = vmul.f32 %v1147, %v1141
    %v1159 = vmul.f32 %v1147, %v1142
    %v1160 = vmul.f32 %v1147, %v1143
    %v1161 = vmul.f32 %v1147, %v1144
    %v1162 = vmul.f32 %v1147, %v1145
    %v1163 = vmul.f32 %v1147, %v1146
    %v1164 = vadd.f32 %v1115, %v1148
    %v1165 = vadd.f32 %v1116, %v1149
    %v1166 = vadd.f32 %v1117, %v1150
    %v1167 = vadd.f32 %v1118, %v1151
    %v1168 = vadd.f32 %v1119, %v1152
    %v1169 = vadd.f32 %v1120, %v1153
    %v1170 = vadd.f32 %v1121, %v1154
    %v1171 = vadd.f32 %v1122, %v1155
    %v1172 = vadd.f32 %v1123, %v1156
    %v1173 = vadd.f32 %v1124, %v1157
    %v1174 = vadd.f32 %v1125, %v1158
    %v1175 = vadd.f32 %v1126, %v1159
    %v1176 = vadd.f32 %v1127, %v1160
    %v1177 = vadd.f32 %v1128, %v1161
    %v1178 = vadd.f32 %v1129, %v1162
    %v1179 = vadd.f32 %v1130, %v1163
    %v1180 = vld [vmem:[%s1032 + $0x3] sm:$0xff]
    %v1181 = vld [vmem:[%s1032 + $0xb] sm:$0xff]
    %v1182 = vld [vmem:[%s1032 + $0x1b] sm:$0xff]
    %v1183 = vld [vmem:[%s1032 + $0x23] sm:$0xff]
    %v1184 = vld [vmem:[%s1032 + $0x33] sm:$0xff]
    %v1185 = vld [vmem:[%s1032 + $0x3b] sm:$0xff]
    %v1186 = vld [vmem:[%s1032 + $0x4b] sm:$0xff]
    %v1187 = vld [vmem:[%s1032 + $0x53] sm:$0xff]
    %v1188 = vld [vmem:[%s1032 + $0x63] sm:$0xff]
    %v1189 = vld [vmem:[%s1032 + $0x6b] sm:$0xff]
    %v1190 = vld [vmem:[%s1032 + $0x7b] sm:$0xff]
    %v1191 = vld [vmem:[%s1032 + $0x83] sm:$0xff]
    %v1192 = vld [vmem:[%s1032 + $0x93] sm:$0xff]
    %v1193 = vld [vmem:[%s1032 + $0x9b] sm:$0xff]
    %v1194 = vld [vmem:[%s1032 + $0xab] sm:$0xff]
    %v1195 = vld [vmem:[%s1032 + $0xb3] sm:$0xff]
    %v1196 = vstv %s47
    %v1197 = vmul.f32 %v1196, %v1180
    %v1198 = vmul.f32 %v1196, %v1181
    %v1199 = vmul.f32 %v1196, %v1182
    %v1200 = vmul.f32 %v1196, %v1183
    %v1201 = vmul.f32 %v1196, %v1184
    %v1202 = vmul.f32 %v1196, %v1185
    %v1203 = vmul.f32 %v1196, %v1186
    %v1204 = vmul.f32 %v1196, %v1187
    %v1205 = vmul.f32 %v1196, %v1188
    %v1206 = vmul.f32 %v1196, %v1189
    %v1207 = vmul.f32 %v1196, %v1190
    %v1208 = vmul.f32 %v1196, %v1191
    %v1209 = vmul.f32 %v1196, %v1192
    %v1210 = vmul.f32 %v1196, %v1193
    %v1211 = vmul.f32 %v1196, %v1194
    %v1212 = vmul.f32 %v1196, %v1195
    %v1213 = vadd.f32 %v1164, %v1197
    %v1214 = vadd.f32 %v1165, %v1198
    %v1215 = vadd.f32 %v1166, %v1199
    %v1216 = vadd.f32 %v1167, %v1200
    %v1217 = vadd.f32 %v1168, %v1201
    %v1218 = vadd.f32 %v1169, %v1202
    %v1219 = vadd.f32 %v1170, %v1203
    %v1220 = vadd.f32 %v1171, %v1204
    %v1221 = vadd.f32 %v1172, %v1205
    %v1222 = vadd.f32 %v1173, %v1206
    %v1223 = vadd.f32 %v1174, %v1207
    %v1224 = vadd.f32 %v1175, %v1208
    %v1225 = vadd.f32 %v1176, %v1209
    %v1226 = vadd.f32 %v1177, %v1210
    %v1227 = vadd.f32 %v1178, %v1211
    %v1228 = vadd.f32 %v1179, %v1212
    %v1229 = vld [vmem:[%s1032 + $0x4] sm:$0xff]
    %v1230 = vld [vmem:[%s1032 + $0xc] sm:$0xff]
    %v1231 = vld [vmem:[%s1032 + $0x1c] sm:$0xff]
    %v1232 = vld [vmem:[%s1032 + $0x24] sm:$0xff]
    %v1233 = vld [vmem:[%s1032 + $0x34] sm:$0xff]
    %v1234 = vld [vmem:[%s1032 + $0x3c] sm:$0xff]
    %v1235 = vld [vmem:[%s1032 + $0x4c] sm:$0xff]
    %v1236 = vld [vmem:[%s1032 + $0x54] sm:$0xff]
    %v1237 = vld [vmem:[%s1032 + $0x64] sm:$0xff]
    %v1238 = vld [vmem:[%s1032 + $0x6c] sm:$0xff]
    %v1239 = vld [vmem:[%s1032 + $0x7c] sm:$0xff]
    %v1240 = vld [vmem:[%s1032 + $0x84] sm:$0xff]
    %v1241 = vld [vmem:[%s1032 + $0x94] sm:$0xff]
    %v1242 = vld [vmem:[%s1032 + $0x9c] sm:$0xff]
    %v1243 = vld [vmem:[%s1032 + $0xac] sm:$0xff]
    %v1244 = vld [vmem:[%s1032 + $0xb4] sm:$0xff]
    %v1245 = vstv %s48
    %v1246 = vmul.f32 %v1245, %v1229
    %v1247 = vmul.f32 %v1245, %v1230
    %v1248 = vmul.f32 %v1245, %v1231
    %v1249 = vmul.f32 %v1245, %v1232
    %v1250 = vmul.f32 %v1245, %v1233
    %v1251 = vmul.f32 %v1245, %v1234
    %v1252 = vmul.f32 %v1245, %v1235
    %v1253 = vmul.f32 %v1245, %v1236
    %v1254 = vmul.f32 %v1245, %v1237
    %v1255 = vmul.f32 %v1245, %v1238
    %v1256 = vmul.f32 %v1245, %v1239
    %v1257 = vmul.f32 %v1245, %v1240
    %v1258 = vmul.f32 %v1245, %v1241
    %v1259 = vmul.f32 %v1245, %v1242
    %v1260 = vmul.f32 %v1245, %v1243
    %v1261 = vmul.f32 %v1245, %v1244
    %v1262 = vadd.f32 %v1213, %v1246
    %v1263 = vadd.f32 %v1214, %v1247
    %v1264 = vadd.f32 %v1215, %v1248
    %v1265 = vadd.f32 %v1216, %v1249
    %v1266 = vadd.f32 %v1217, %v1250
    %v1267 = vadd.f32 %v1218, %v1251
    %v1268 = vadd.f32 %v1219, %v1252
    %v1269 = vadd.f32 %v1220, %v1253
    %v1270 = vadd.f32 %v1221, %v1254
    %v1271 = vadd.f32 %v1222, %v1255
    %v1272 = vadd.f32 %v1223, %v1256
    %v1273 = vadd.f32 %v1224, %v1257
    %v1274 = vadd.f32 %v1225, %v1258
    %v1275 = vadd.f32 %v1226, %v1259
    %v1276 = vadd.f32 %v1227, %v1260
    %v1277 = vadd.f32 %v1228, %v1261
    %vm1278 = vcmask 64512
    %1279 = vst.msk [vmem:[%s2] sm:$0xff] %vm1278, %v1262
    %1280 = vst.msk [vmem:[%s2 + $0x8] sm:$0xff] %vm1278, %v1263
    %1281 = vst.msk [vmem:[%s2 + $0x10] sm:$0xff] %vm1278, %v1264
    %1282 = vst.msk [vmem:[%s2 + $0x18] sm:$0xff] %vm1278, %v1265
    %1283 = vst.msk [vmem:[%s2 + $0x20] sm:$0xff] %vm1278, %v1266
    %1284 = vst.msk [vmem:[%s2 + $0x28] sm:$0xff] %vm1278, %v1267
    %1285 = vst.msk [vmem:[%s2 + $0x30] sm:$0xff] %vm1278, %v1268
    %1286 = vst.msk [vmem:[%s2 + $0x38] sm:$0xff] %vm1278, %v1269
    %1287 = vst.msk [vmem:[%s2 + $0x40] sm:$0xff] %vm1278, %v1270
    %1288 = vst.msk [vmem:[%s2 + $0x48] sm:$0xff] %vm1278, %v1271
    %1289 = vst.msk [vmem:[%s2 + $0x50] sm:$0xff] %vm1278, %v1272
    %1290 = vst.msk [vmem:[%s2 + $0x58] sm:$0xff] %vm1278, %v1273
    %1291 = vst.msk [vmem:[%s2 + $0x60] sm:$0xff] %vm1278, %v1274
    %1292 = vst.msk [vmem:[%s2 + $0x68] sm:$0xff] %vm1278, %v1275
    %1293 = vst.msk [vmem:[%s2 + $0x70] sm:$0xff] %vm1278, %v1276
    %1294 = vst.msk [vmem:[%s2 + $0x78] sm:$0xff] %vm1278, %v1277
    %s1295 = scalar_lea.vmem %s1, 192
    %v1296 = vld [vmem:[%s1295] sm:$0xff]
    %v1297 = vld [vmem:[%s1295 + $0x8] sm:$0xff]
    %v1298 = vld [vmem:[%s1295 + $0x18] sm:$0xff]
    %v1299 = vld [vmem:[%s1295 + $0x20] sm:$0xff]
    %v1300 = vld [vmem:[%s1295 + $0x30] sm:$0xff]
    %v1301 = vld [vmem:[%s1295 + $0x38] sm:$0xff]
    %v1302 = vld [vmem:[%s1295 + $0x48] sm:$0xff]
    %v1303 = vld [vmem:[%s1295 + $0x50] sm:$0xff]
    %v1304 = vld [vmem:[%s1295 + $0x60] sm:$0xff]
    %v1305 = vld [vmem:[%s1295 + $0x68] sm:$0xff]
    %v1306 = vld [vmem:[%s1295 + $0x78] sm:$0xff]
    %v1307 = vld [vmem:[%s1295 + $0x80] sm:$0xff]
    %v1308 = vld [vmem:[%s1295 + $0x90] sm:$0xff]
    %v1309 = vld [vmem:[%s1295 + $0x98] sm:$0xff]
    %v1310 = vld [vmem:[%s1295 + $0xa8] sm:$0xff]
    %v1311 = vld [vmem:[%s1295 + $0xb0] sm:$0xff]
    %v1312 = vmul.f32 %v65, %v1296
    %v1313 = vmul.f32 %v65, %v1297
    %v1314 = vmul.f32 %v65, %v1298
    %v1315 = vmul.f32 %v65, %v1299
    %v1316 = vmul.f32 %v65, %v1300
    %v1317 = vmul.f32 %v65, %v1301
    %v1318 = vmul.f32 %v65, %v1302
    %v1319 = vmul.f32 %v65, %v1303
    %v1320 = vmul.f32 %v65, %v1304
    %v1321 = vmul.f32 %v65, %v1305
    %v1322 = vmul.f32 %v65, %v1306
    %v1323 = vmul.f32 %v65, %v1307
    %v1324 = vmul.f32 %v65, %v1308
    %v1325 = vmul.f32 %v65, %v1309
    %v1326 = vmul.f32 %v65, %v1310
    %v1327 = vmul.f32 %v65, %v1311
    %v1328 = vadd.f32 %v1312, 0.0
    %v1329 = vadd.f32 %v1313, 0.0
    %v1330 = vadd.f32 %v1314, 0.0
    %v1331 = vadd.f32 %v1315, 0.0
    %v1332 = vadd.f32 %v1316, 0.0
    %v1333 = vadd.f32 %v1317, 0.0
    %v1334 = vadd.f32 %v1318, 0.0
    %v1335 = vadd.f32 %v1319, 0.0
    %v1336 = vadd.f32 %v1320, 0.0
    %v1337 = vadd.f32 %v1321, 0.0
    %v1338 = vadd.f32 %v1322, 0.0
    %v1339 = vadd.f32 %v1323, 0.0
    %v1340 = vadd.f32 %v1324, 0.0
    %v1341 = vadd.f32 %v1325, 0.0
    %v1342 = vadd.f32 %v1326, 0.0
    %v1343 = vadd.f32 %v1327, 0.0
    %v1344 = vld [vmem:[%s1295 + $0x1] sm:$0xff]
    %v1345 = vld [vmem:[%s1295 + $0x9] sm:$0xff]
    %v1346 = vld [vmem:[%s1295 + $0x19] sm:$0xff]
    %v1347 = vld [vmem:[%s1295 + $0x21] sm:$0xff]
    %v1348 = vld [vmem:[%s1295 + $0x31] sm:$0xff]
    %v1349 = vld [vmem:[%s1295 + $0x39] sm:$0xff]
    %v1350 = vld [vmem:[%s1295 + $0x49] sm:$0xff]
    %v1351 = vld [vmem:[%s1295 + $0x51] sm:$0xff]
    %v1352 = vld [vmem:[%s1295 + $0x61] sm:$0xff]
    %v1353 = vld [vmem:[%s1295 + $0x69] sm:$0xff]
    %v1354 = vld [vmem:[%s1295 + $0x79] sm:$0xff]
    %v1355 = vld [vmem:[%s1295 + $0x81] sm:$0xff]
    %v1356 = vld [vmem:[%s1295 + $0x91] sm:$0xff]
    %v1357 = vld [vmem:[%s1295 + $0x99] sm:$0xff]
    %v1358 = vld [vmem:[%s1295 + $0xa9] sm:$0xff]
    %v1359 = vld [vmem:[%s1295 + $0xb1] sm:$0xff]
    %v1360 = vmul.f32 %v114, %v1344
    %v1361 = vmul.f32 %v114, %v1345
    %v1362 = vmul.f32 %v114, %v1346
    %v1363 = vmul.f32 %v114, %v1347
    %v1364 = vmul.f32 %v114, %v1348
    %v1365 = vmul.f32 %v114, %v1349
    %v1366 = vmul.f32 %v114, %v1350
    %v1367 = vmul.f32 %v114, %v1351
    %v1368 = vmul.f32 %v114, %v1352
    %v1369 = vmul.f32 %v114, %v1353
    %v1370 = vmul.f32 %v114, %v1354
    %v1371 = vmul.f32 %v114, %v1355
    %v1372 = vmul.f32 %v114, %v1356
    %v1373 = vmul.f32 %v114, %v1357
    %v1374 = vmul.f32 %v114, %v1358
    %v1375 = vmul.f32 %v114, %v1359
    %v1376 = vadd.f32 %v1328, %v1360
    %v1377 = vadd.f32 %v1329, %v1361
    %v1378 = vadd.f32 %v1330, %v1362
    %v1379 = vadd.f32 %v1331, %v1363
    %v1380 = vadd.f32 %v1332, %v1364
    %v1381 = vadd.f32 %v1333, %v1365
    %v1382 = vadd.f32 %v1334, %v1366
    %v1383 = vadd.f32 %v1335, %v1367
    %v1384 = vadd.f32 %v1336, %v1368
    %v1385 = vadd.f32 %v1337, %v1369
    %v1386 = vadd.f32 %v1338, %v1370
    %v1387 = vadd.f32 %v1339, %v1371
    %v1388 = vadd.f32 %v1340, %v1372
    %v1389 = vadd.f32 %v1341, %v1373
    %v1390 = vadd.f32 %v1342, %v1374
    %v1391 = vadd.f32 %v1343, %v1375
    %v1392 = vld [vmem:[%s1295 + $0x2] sm:$0xff]
    %v1393 = vld [vmem:[%s1295 + $0xa] sm:$0xff]
    %v1394 = vld [vmem:[%s1295 + $0x1a] sm:$0xff]
    %v1395 = vld [vmem:[%s1295 + $0x22] sm:$0xff]
    %v1396 = vld [vmem:[%s1295 + $0x32] sm:$0xff]
    %v1397 = vld [vmem:[%s1295 + $0x3a] sm:$0xff]
    %v1398 = vld [vmem:[%s1295 + $0x4a] sm:$0xff]
    %v1399 = vld [vmem:[%s1295 + $0x52] sm:$0xff]
    %v1400 = vld [vmem:[%s1295 + $0x62] sm:$0xff]
    %v1401 = vld [vmem:[%s1295 + $0x6a] sm:$0xff]
    %v1402 = vld [vmem:[%s1295 + $0x7a] sm:$0xff]
    %v1403 = vld [vmem:[%s1295 + $0x82] sm:$0xff]
    %v1404 = vld [vmem:[%s1295 + $0x92] sm:$0xff]
    %v1405 = vld [vmem:[%s1295 + $0x9a] sm:$0xff]
    %v1406 = vld [vmem:[%s1295 + $0xaa] sm:$0xff]
    %v1407 = vld [vmem:[%s1295 + $0xb2] sm:$0xff]
    %v1408 = vmul.f32 %v163, %v1392
    %v1409 = vmul.f32 %v163, %v1393
    %v1410 = vmul.f32 %v163, %v1394
    %v1411 = vmul.f32 %v163, %v1395
    %v1412 = vmul.f32 %v163, %v1396
    %v1413 = vmul.f32 %v163, %v1397
    %v1414 = vmul.f32 %v163, %v1398
    %v1415 = vmul.f32 %v163, %v1399
    %v1416 = vmul.f32 %v163, %v1400
    %v1417 = vmul.f32 %v163, %v1401
    %v1418 = vmul.f32 %v163, %v1402
    %v1419 = vmul.f32 %v163, %v1403
    %v1420 = vmul.f32 %v163, %v1404
    %v1421 = vmul.f32 %v163, %v1405
    %v1422 = vmul.f32 %v163, %v1406
    %v1423 = vmul.f32 %v163, %v1407
    %v1424 = vadd.f32 %v1376, %v1408
    %v1425 = vadd.f32 %v1377, %v1409
    %v1426 = vadd.f32 %v1378, %v1410
    %v1427 = vadd.f32 %v1379, %v1411
    %v1428 = vadd.f32 %v1380, %v1412
    %v1429 = vadd.f32 %v1381, %v1413
    %v1430 = vadd.f32 %v1382, %v1414
    %v1431 = vadd.f32 %v1383, %v1415
    %v1432 = vadd.f32 %v1384, %v1416
    %v1433 = vadd.f32 %v1385, %v1417
    %v1434 = vadd.f32 %v1386, %v1418
    %v1435 = vadd.f32 %v1387, %v1419
    %v1436 = vadd.f32 %v1388, %v1420
    %v1437 = vadd.f32 %v1389, %v1421
    %v1438 = vadd.f32 %v1390, %v1422
    %v1439 = vadd.f32 %v1391, %v1423
    %v1440 = vld [vmem:[%s1295 + $0x3] sm:$0xff]
    %v1441 = vld [vmem:[%s1295 + $0xb] sm:$0xff]
    %v1442 = vld [vmem:[%s1295 + $0x1b] sm:$0xff]
    %v1443 = vld [vmem:[%s1295 + $0x23] sm:$0xff]
    %v1444 = vld [vmem:[%s1295 + $0x33] sm:$0xff]
    %v1445 = vld [vmem:[%s1295 + $0x3b] sm:$0xff]
    %v1446 = vld [vmem:[%s1295 + $0x4b] sm:$0xff]
    %v1447 = vld [vmem:[%s1295 + $0x53] sm:$0xff]
    %v1448 = vld [vmem:[%s1295 + $0x63] sm:$0xff]
    %v1449 = vld [vmem:[%s1295 + $0x6b] sm:$0xff]
    %v1450 = vld [vmem:[%s1295 + $0x7b] sm:$0xff]
    %v1451 = vld [vmem:[%s1295 + $0x83] sm:$0xff]
    %v1452 = vld [vmem:[%s1295 + $0x93] sm:$0xff]
    %v1453 = vld [vmem:[%s1295 + $0x9b] sm:$0xff]
    %v1454 = vld [vmem:[%s1295 + $0xab] sm:$0xff]
    %v1455 = vld [vmem:[%s1295 + $0xb3] sm:$0xff]
    %v1456 = vmul.f32 %v212, %v1440
    %v1457 = vmul.f32 %v212, %v1441
    %v1458 = vmul.f32 %v212, %v1442
    %v1459 = vmul.f32 %v212, %v1443
    %v1460 = vmul.f32 %v212, %v1444
    %v1461 = vmul.f32 %v212, %v1445
    %v1462 = vmul.f32 %v212, %v1446
    %v1463 = vmul.f32 %v212, %v1447
    %v1464 = vmul.f32 %v212, %v1448
    %v1465 = vmul.f32 %v212, %v1449
    %v1466 = vmul.f32 %v212, %v1450
    %v1467 = vmul.f32 %v212, %v1451
    %v1468 = vmul.f32 %v212, %v1452
    %v1469 = vmul.f32 %v212, %v1453
    %v1470 = vmul.f32 %v212, %v1454
    %v1471 = vmul.f32 %v212, %v1455
    %v1472 = vadd.f32 %v1424, %v1456
    %v1473 = vadd.f32 %v1425, %v1457
    %v1474 = vadd.f32 %v1426, %v1458
    %v1475 = vadd.f32 %v1427, %v1459
    %v1476 = vadd.f32 %v1428, %v1460
    %v1477 = vadd.f32 %v1429, %v1461
    %v1478 = vadd.f32 %v1430, %v1462
    %v1479 = vadd.f32 %v1431, %v1463
    %v1480 = vadd.f32 %v1432, %v1464
    %v1481 = vadd.f32 %v1433, %v1465
    %v1482 = vadd.f32 %v1434, %v1466
    %v1483 = vadd.f32 %v1435, %v1467
    %v1484 = vadd.f32 %v1436, %v1468
    %v1485 = vadd.f32 %v1437, %v1469
    %v1486 = vadd.f32 %v1438, %v1470
    %v1487 = vadd.f32 %v1439, %v1471
    %v1488 = vld [vmem:[%s1295 + $0x4] sm:$0xff]
    %v1489 = vld [vmem:[%s1295 + $0xc] sm:$0xff]
    %v1490 = vld [vmem:[%s1295 + $0x1c] sm:$0xff]
    %v1491 = vld [vmem:[%s1295 + $0x24] sm:$0xff]
    %v1492 = vld [vmem:[%s1295 + $0x34] sm:$0xff]
    %v1493 = vld [vmem:[%s1295 + $0x3c] sm:$0xff]
    %v1494 = vld [vmem:[%s1295 + $0x4c] sm:$0xff]
    %v1495 = vld [vmem:[%s1295 + $0x54] sm:$0xff]
    %v1496 = vld [vmem:[%s1295 + $0x64] sm:$0xff]
    %v1497 = vld [vmem:[%s1295 + $0x6c] sm:$0xff]
    %v1498 = vld [vmem:[%s1295 + $0x7c] sm:$0xff]
    %v1499 = vld [vmem:[%s1295 + $0x84] sm:$0xff]
    %v1500 = vld [vmem:[%s1295 + $0x94] sm:$0xff]
    %v1501 = vld [vmem:[%s1295 + $0x9c] sm:$0xff]
    %v1502 = vld [vmem:[%s1295 + $0xac] sm:$0xff]
    %v1503 = vld [vmem:[%s1295 + $0xb4] sm:$0xff]
    %v1504 = vmul.f32 %v261, %v1488
    %v1505 = vmul.f32 %v261, %v1489
    %v1506 = vmul.f32 %v261, %v1490
    %v1507 = vmul.f32 %v261, %v1491
    %v1508 = vmul.f32 %v261, %v1492
    %v1509 = vmul.f32 %v261, %v1493
    %v1510 = vmul.f32 %v261, %v1494
    %v1511 = vmul.f32 %v261, %v1495
    %v1512 = vmul.f32 %v261, %v1496
    %v1513 = vmul.f32 %v261, %v1497
    %v1514 = vmul.f32 %v261, %v1498
    %v1515 = vmul.f32 %v261, %v1499
    %v1516 = vmul.f32 %v261, %v1500
    %v1517 = vmul.f32 %v261, %v1501
    %v1518 = vmul.f32 %v261, %v1502
    %v1519 = vmul.f32 %v261, %v1503
    %v1520 = vadd.f32 %v1472, %v1504
    %v1521 = vadd.f32 %v1473, %v1505
    %v1522 = vadd.f32 %v1474, %v1506
    %v1523 = vadd.f32 %v1475, %v1507
    %v1524 = vadd.f32 %v1476, %v1508
    %v1525 = vadd.f32 %v1477, %v1509
    %v1526 = vadd.f32 %v1478, %v1510
    %v1527 = vadd.f32 %v1479, %v1511
    %v1528 = vadd.f32 %v1480, %v1512
    %v1529 = vadd.f32 %v1481, %v1513
    %v1530 = vadd.f32 %v1482, %v1514
    %v1531 = vadd.f32 %v1483, %v1515
    %v1532 = vadd.f32 %v1484, %v1516
    %v1533 = vadd.f32 %v1485, %v1517
    %v1534 = vadd.f32 %v1486, %v1518
    %v1535 = vadd.f32 %v1487, %v1519
    %s1536 = scalar_lea.vmem %s1, 216
    %v1537 = vld [vmem:[%s1536] sm:$0xff]
    %v1538 = vld [vmem:[%s1536 + $0x8] sm:$0xff]
    %v1539 = vld [vmem:[%s1536 + $0x18] sm:$0xff]
    %v1540 = vld [vmem:[%s1536 + $0x20] sm:$0xff]
    %v1541 = vld [vmem:[%s1536 + $0x30] sm:$0xff]
    %v1542 = vld [vmem:[%s1536 + $0x38] sm:$0xff]
    %v1543 = vld [vmem:[%s1536 + $0x48] sm:$0xff]
    %v1544 = vld [vmem:[%s1536 + $0x50] sm:$0xff]
    %v1545 = vld [vmem:[%s1536 + $0x60] sm:$0xff]
    %v1546 = vld [vmem:[%s1536 + $0x68] sm:$0xff]
    %v1547 = vld [vmem:[%s1536 + $0x78] sm:$0xff]
    %v1548 = vld [vmem:[%s1536 + $0x80] sm:$0xff]
    %v1549 = vld [vmem:[%s1536 + $0x90] sm:$0xff]
    %v1550 = vld [vmem:[%s1536 + $0x98] sm:$0xff]
    %v1551 = vld [vmem:[%s1536 + $0xa8] sm:$0xff]
    %v1552 = vld [vmem:[%s1536 + $0xb0] sm:$0xff]
    %v1553 = vmul.f32 %v311, %v1537
    %v1554 = vmul.f32 %v311, %v1538
    %v1555 = vmul.f32 %v311, %v1539
    %v1556 = vmul.f32 %v311, %v1540
    %v1557 = vmul.f32 %v311, %v1541
    %v1558 = vmul.f32 %v311, %v1542
    %v1559 = vmul.f32 %v311, %v1543
    %v1560 = vmul.f32 %v311, %v1544
    %v1561 = vmul.f32 %v311, %v1545
    %v1562 = vmul.f32 %v311, %v1546
    %v1563 = vmul.f32 %v311, %v1547
    %v1564 = vmul.f32 %v311, %v1548
    %v1565 = vmul.f32 %v311, %v1549
    %v1566 = vmul.f32 %v311, %v1550
    %v1567 = vmul.f32 %v311, %v1551
    %v1568 = vmul.f32 %v311, %v1552
    %v1569 = vadd.f32 %v1520, %v1553
    %v1570 = vadd.f32 %v1521, %v1554
    %v1571 = vadd.f32 %v1522, %v1555
    %v1572 = vadd.f32 %v1523, %v1556
    %v1573 = vadd.f32 %v1524, %v1557
    %v1574 = vadd.f32 %v1525, %v1558
    %v1575 = vadd.f32 %v1526, %v1559
    %v1576 = vadd.f32 %v1527, %v1560
    %v1577 = vadd.f32 %v1528, %v1561
    %v1578 = vadd.f32 %v1529, %v1562
    %v1579 = vadd.f32 %v1530, %v1563
    %v1580 = vadd.f32 %v1531, %v1564
    %v1581 = vadd.f32 %v1532, %v1565
    %v1582 = vadd.f32 %v1533, %v1566
    %v1583 = vadd.f32 %v1534, %v1567
    %v1584 = vadd.f32 %v1535, %v1568
    %v1585 = vld [vmem:[%s1536 + $0x1] sm:$0xff]
    %v1586 = vld [vmem:[%s1536 + $0x9] sm:$0xff]
    %v1587 = vld [vmem:[%s1536 + $0x19] sm:$0xff]
    %v1588 = vld [vmem:[%s1536 + $0x21] sm:$0xff]
    %v1589 = vld [vmem:[%s1536 + $0x31] sm:$0xff]
    %v1590 = vld [vmem:[%s1536 + $0x39] sm:$0xff]
    %v1591 = vld [vmem:[%s1536 + $0x49] sm:$0xff]
    %v1592 = vld [vmem:[%s1536 + $0x51] sm:$0xff]
    %v1593 = vld [vmem:[%s1536 + $0x61] sm:$0xff]
    %v1594 = vld [vmem:[%s1536 + $0x69] sm:$0xff]
    %v1595 = vld [vmem:[%s1536 + $0x79] sm:$0xff]
    %v1596 = vld [vmem:[%s1536 + $0x81] sm:$0xff]
    %v1597 = vld [vmem:[%s1536 + $0x91] sm:$0xff]
    %v1598 = vld [vmem:[%s1536 + $0x99] sm:$0xff]
    %v1599 = vld [vmem:[%s1536 + $0xa9] sm:$0xff]
    %v1600 = vld [vmem:[%s1536 + $0xb1] sm:$0xff]
    %v1601 = vmul.f32 %v360, %v1585
    %v1602 = vmul.f32 %v360, %v1586
    %v1603 = vmul.f32 %v360, %v1587
    %v1604 = vmul.f32 %v360, %v1588
    %v1605 = vmul.f32 %v360, %v1589
    %v1606 = vmul.f32 %v360, %v1590
    %v1607 = vmul.f32 %v360, %v1591
    %v1608 = vmul.f32 %v360, %v1592
    %v1609 = vmul.f32 %v360, %v1593
    %v1610 = vmul.f32 %v360, %v1594
    %v1611 = vmul.f32 %v360, %v1595
    %v1612 = vmul.f32 %v360, %v1596
    %v1613 = vmul.f32 %v360, %v1597
    %v1614 = vmul.f32 %v360, %v1598
    %v1615 = vmul.f32 %v360, %v1599
    %v1616 = vmul.f32 %v360, %v1600
    %v1617 = vadd.f32 %v1569, %v1601
    %v1618 = vadd.f32 %v1570, %v1602
    %v1619 = vadd.f32 %v1571, %v1603
    %v1620 = vadd.f32 %v1572, %v1604
    %v1621 = vadd.f32 %v1573, %v1605
    %v1622 = vadd.f32 %v1574, %v1606
    %v1623 = vadd.f32 %v1575, %v1607
    %v1624 = vadd.f32 %v1576, %v1608
    %v1625 = vadd.f32 %v1577, %v1609
    %v1626 = vadd.f32 %v1578, %v1610
    %v1627 = vadd.f32 %v1579, %v1611
    %v1628 = vadd.f32 %v1580, %v1612
    %v1629 = vadd.f32 %v1581, %v1613
    %v1630 = vadd.f32 %v1582, %v1614
    %v1631 = vadd.f32 %v1583, %v1615
    %v1632 = vadd.f32 %v1584, %v1616
    %v1633 = vld [vmem:[%s1536 + $0x2] sm:$0xff]
    %v1634 = vld [vmem:[%s1536 + $0xa] sm:$0xff]
    %v1635 = vld [vmem:[%s1536 + $0x1a] sm:$0xff]
    %v1636 = vld [vmem:[%s1536 + $0x22] sm:$0xff]
    %v1637 = vld [vmem:[%s1536 + $0x32] sm:$0xff]
    %v1638 = vld [vmem:[%s1536 + $0x3a] sm:$0xff]
    %v1639 = vld [vmem:[%s1536 + $0x4a] sm:$0xff]
    %v1640 = vld [vmem:[%s1536 + $0x52] sm:$0xff]
    %v1641 = vld [vmem:[%s1536 + $0x62] sm:$0xff]
    %v1642 = vld [vmem:[%s1536 + $0x6a] sm:$0xff]
    %v1643 = vld [vmem:[%s1536 + $0x7a] sm:$0xff]
    %v1644 = vld [vmem:[%s1536 + $0x82] sm:$0xff]
    %v1645 = vld [vmem:[%s1536 + $0x92] sm:$0xff]
    %v1646 = vld [vmem:[%s1536 + $0x9a] sm:$0xff]
    %v1647 = vld [vmem:[%s1536 + $0xaa] sm:$0xff]
    %v1648 = vld [vmem:[%s1536 + $0xb2] sm:$0xff]
    %v1649 = vmul.f32 %v409, %v1633
    %v1650 = vmul.f32 %v409, %v1634
    %v1651 = vmul.f32 %v409, %v1635
    %v1652 = vmul.f32 %v409, %v1636
    %v1653 = vmul.f32 %v409, %v1637
    %v1654 = vmul.f32 %v409, %v1638
    %v1655 = vmul.f32 %v409, %v1639
    %v1656 = vmul.f32 %v409, %v1640
    %v1657 = vmul.f32 %v409, %v1641
    %v1658 = vmul.f32 %v409, %v1642
    %v1659 = vmul.f32 %v409, %v1643
    %v1660 = vmul.f32 %v409, %v1644
    %v1661 = vmul.f32 %v409, %v1645
    %v1662 = vmul.f32 %v409, %v1646
    %v1663 = vmul.f32 %v409, %v1647
    %v1664 = vmul.f32 %v409, %v1648
    %v1665 = vadd.f32 %v1617, %v1649
    %v1666 = vadd.f32 %v1618, %v1650
    %v1667 = vadd.f32 %v1619, %v1651
    %v1668 = vadd.f32 %v1620, %v1652
    %v1669 = vadd.f32 %v1621, %v1653
    %v1670 = vadd.f32 %v1622, %v1654
    %v1671 = vadd.f32 %v1623, %v1655
    %v1672 = vadd.f32 %v1624, %v1656
    %v1673 = vadd.f32 %v1625, %v1657
    %v1674 = vadd.f32 %v1626, %v1658
    %v1675 = vadd.f32 %v1627, %v1659
    %v1676 = vadd.f32 %v1628, %v1660
    %v1677 = vadd.f32 %v1629, %v1661
    %v1678 = vadd.f32 %v1630, %v1662
    %v1679 = vadd.f32 %v1631, %v1663
    %v1680 = vadd.f32 %v1632, %v1664
    %v1681 = vld [vmem:[%s1536 + $0x3] sm:$0xff]
    %v1682 = vld [vmem:[%s1536 + $0xb] sm:$0xff]
    %v1683 = vld [vmem:[%s1536 + $0x1b] sm:$0xff]
    %v1684 = vld [vmem:[%s1536 + $0x23] sm:$0xff]
    %v1685 = vld [vmem:[%s1536 + $0x33] sm:$0xff]
    %v1686 = vld [vmem:[%s1536 + $0x3b] sm:$0xff]
    %v1687 = vld [vmem:[%s1536 + $0x4b] sm:$0xff]
    %v1688 = vld [vmem:[%s1536 + $0x53] sm:$0xff]
    %v1689 = vld [vmem:[%s1536 + $0x63] sm:$0xff]
    %v1690 = vld [vmem:[%s1536 + $0x6b] sm:$0xff]
    %v1691 = vld [vmem:[%s1536 + $0x7b] sm:$0xff]
    %v1692 = vld [vmem:[%s1536 + $0x83] sm:$0xff]
    %v1693 = vld [vmem:[%s1536 + $0x93] sm:$0xff]
    %v1694 = vld [vmem:[%s1536 + $0x9b] sm:$0xff]
    %v1695 = vld [vmem:[%s1536 + $0xab] sm:$0xff]
    %v1696 = vld [vmem:[%s1536 + $0xb3] sm:$0xff]
    %v1697 = vmul.f32 %v458, %v1681
    %v1698 = vmul.f32 %v458, %v1682
    %v1699 = vmul.f32 %v458, %v1683
    %v1700 = vmul.f32 %v458, %v1684
    %v1701 = vmul.f32 %v458, %v1685
    %v1702 = vmul.f32 %v458, %v1686
    %v1703 = vmul.f32 %v458, %v1687
    %v1704 = vmul.f32 %v458, %v1688
    %v1705 = vmul.f32 %v458, %v1689
    %v1706 = vmul.f32 %v458, %v1690
    %v1707 = vmul.f32 %v458, %v1691
    %v1708 = vmul.f32 %v458, %v1692
    %v1709 = vmul.f32 %v458, %v1693
    %v1710 = vmul.f32 %v458, %v1694
    %v1711 = vmul.f32 %v458, %v1695
    %v1712 = vmul.f32 %v458, %v1696
    %v1713 = vadd.f32 %v1665, %v1697
    %v1714 = vadd.f32 %v1666, %v1698
    %v1715 = vadd.f32 %v1667, %v1699
    %v1716 = vadd.f32 %v1668, %v1700
    %v1717 = vadd.f32 %v1669, %v1701
    %v1718 = vadd.f32 %v1670, %v1702
    %v1719 = vadd.f32 %v1671, %v1703
    %v1720 = vadd.f32 %v1672, %v1704
    %v1721 = vadd.f32 %v1673, %v1705
    %v1722 = vadd.f32 %v1674, %v1706
    %v1723 = vadd.f32 %v1675, %v1707
    %v1724 = vadd.f32 %v1676, %v1708
    %v1725 = vadd.f32 %v1677, %v1709
    %v1726 = vadd.f32 %v1678, %v1710
    %v1727 = vadd.f32 %v1679, %v1711
    %v1728 = vadd.f32 %v1680, %v1712
    %v1729 = vld [vmem:[%s1536 + $0x4] sm:$0xff]
    %v1730 = vld [vmem:[%s1536 + $0xc] sm:$0xff]
    %v1731 = vld [vmem:[%s1536 + $0x1c] sm:$0xff]
    %v1732 = vld [vmem:[%s1536 + $0x24] sm:$0xff]
    %v1733 = vld [vmem:[%s1536 + $0x34] sm:$0xff]
    %v1734 = vld [vmem:[%s1536 + $0x3c] sm:$0xff]
    %v1735 = vld [vmem:[%s1536 + $0x4c] sm:$0xff]
    %v1736 = vld [vmem:[%s1536 + $0x54] sm:$0xff]
    %v1737 = vld [vmem:[%s1536 + $0x64] sm:$0xff]
    %v1738 = vld [vmem:[%s1536 + $0x6c] sm:$0xff]
    %v1739 = vld [vmem:[%s1536 + $0x7c] sm:$0xff]
    %v1740 = vld [vmem:[%s1536 + $0x84] sm:$0xff]
    %v1741 = vld [vmem:[%s1536 + $0x94] sm:$0xff]
    %v1742 = vld [vmem:[%s1536 + $0x9c] sm:$0xff]
    %v1743 = vld [vmem:[%s1536 + $0xac] sm:$0xff]
    %v1744 = vld [vmem:[%s1536 + $0xb4] sm:$0xff]
    %v1745 = vmul.f32 %v507, %v1729
    %v1746 = vmul.f32 %v507, %v1730
    %v1747 = vmul.f32 %v507, %v1731
    %v1748 = vmul.f32 %v507, %v1732
    %v1749 = vmul.f32 %v507, %v1733
    %v1750 = vmul.f32 %v507, %v1734
    %v1751 = vmul.f32 %v507, %v1735
    %v1752 = vmul.f32 %v507, %v1736
    %v1753 = vmul.f32 %v507, %v1737
    %v1754 = vmul.f32 %v507, %v1738
    %v1755 = vmul.f32 %v507, %v1739
    %v1756 = vmul.f32 %v507, %v1740
    %v1757 = vmul.f32 %v507, %v1741
    %v1758 = vmul.f32 %v507, %v1742
    %v1759 = vmul.f32 %v507, %v1743
    %v1760 = vmul.f32 %v507, %v1744
    %v1761 = vadd.f32 %v1713, %v1745
    %v1762 = vadd.f32 %v1714, %v1746
    %v1763 = vadd.f32 %v1715, %v1747
    %v1764 = vadd.f32 %v1716, %v1748
    %v1765 = vadd.f32 %v1717, %v1749
    %v1766 = vadd.f32 %v1718, %v1750
    %v1767 = vadd.f32 %v1719, %v1751
    %v1768 = vadd.f32 %v1720, %v1752
    %v1769 = vadd.f32 %v1721, %v1753
    %v1770 = vadd.f32 %v1722, %v1754
    %v1771 = vadd.f32 %v1723, %v1755
    %v1772 = vadd.f32 %v1724, %v1756
    %v1773 = vadd.f32 %v1725, %v1757
    %v1774 = vadd.f32 %v1726, %v1758
    %v1775 = vadd.f32 %v1727, %v1759
    %v1776 = vadd.f32 %v1728, %v1760
    %s1777 = scalar_lea.vmem %s1, 240
    %v1778 = vld [vmem:[%s1777] sm:$0xff]
    %v1779 = vld [vmem:[%s1777 + $0x8] sm:$0xff]
    %v1780 = vld [vmem:[%s1777 + $0x18] sm:$0xff]
    %v1781 = vld [vmem:[%s1777 + $0x20] sm:$0xff]
    %v1782 = vld [vmem:[%s1777 + $0x30] sm:$0xff]
    %v1783 = vld [vmem:[%s1777 + $0x38] sm:$0xff]
    %v1784 = vld [vmem:[%s1777 + $0x48] sm:$0xff]
    %v1785 = vld [vmem:[%s1777 + $0x50] sm:$0xff]
    %v1786 = vld [vmem:[%s1777 + $0x60] sm:$0xff]
    %v1787 = vld [vmem:[%s1777 + $0x68] sm:$0xff]
    %v1788 = vld [vmem:[%s1777 + $0x78] sm:$0xff]
    %v1789 = vld [vmem:[%s1777 + $0x80] sm:$0xff]
    %v1790 = vld [vmem:[%s1777 + $0x90] sm:$0xff]
    %v1791 = vld [vmem:[%s1777 + $0x98] sm:$0xff]
    %v1792 = vld [vmem:[%s1777 + $0xa8] sm:$0xff]
    %v1793 = vld [vmem:[%s1777 + $0xb0] sm:$0xff]
    %v1794 = vmul.f32 %v557, %v1778
    %v1795 = vmul.f32 %v557, %v1779
    %v1796 = vmul.f32 %v557, %v1780
    %v1797 = vmul.f32 %v557, %v1781
    %v1798 = vmul.f32 %v557, %v1782
    %v1799 = vmul.f32 %v557, %v1783
    %v1800 = vmul.f32 %v557, %v1784
    %v1801 = vmul.f32 %v557, %v1785
    %v1802 = vmul.f32 %v557, %v1786
    %v1803 = vmul.f32 %v557, %v1787
    %v1804 = vmul.f32 %v557, %v1788
    %v1805 = vmul.f32 %v557, %v1789
    %v1806 = vmul.f32 %v557, %v1790
    %v1807 = vmul.f32 %v557, %v1791
    %v1808 = vmul.f32 %v557, %v1792
    %v1809 = vmul.f32 %v557, %v1793
    %v1810 = vadd.f32 %v1761, %v1794
    %v1811 = vadd.f32 %v1762, %v1795
    %v1812 = vadd.f32 %v1763, %v1796
    %v1813 = vadd.f32 %v1764, %v1797
    %v1814 = vadd.f32 %v1765, %v1798
    %v1815 = vadd.f32 %v1766, %v1799
    %v1816 = vadd.f32 %v1767, %v1800
    %v1817 = vadd.f32 %v1768, %v1801
    %v1818 = vadd.f32 %v1769, %v1802
    %v1819 = vadd.f32 %v1770, %v1803
    %v1820 = vadd.f32 %v1771, %v1804
    %v1821 = vadd.f32 %v1772, %v1805
    %v1822 = vadd.f32 %v1773, %v1806
    %v1823 = vadd.f32 %v1774, %v1807
    %v1824 = vadd.f32 %v1775, %v1808
    %v1825 = vadd.f32 %v1776, %v1809
    %v1826 = vld [vmem:[%s1777 + $0x1] sm:$0xff]
    %v1827 = vld [vmem:[%s1777 + $0x9] sm:$0xff]
    %v1828 = vld [vmem:[%s1777 + $0x19] sm:$0xff]
    %v1829 = vld [vmem:[%s1777 + $0x21] sm:$0xff]
    %v1830 = vld [vmem:[%s1777 + $0x31] sm:$0xff]
    %v1831 = vld [vmem:[%s1777 + $0x39] sm:$0xff]
    %v1832 = vld [vmem:[%s1777 + $0x49] sm:$0xff]
    %v1833 = vld [vmem:[%s1777 + $0x51] sm:$0xff]
    %v1834 = vld [vmem:[%s1777 + $0x61] sm:$0xff]
    %v1835 = vld [vmem:[%s1777 + $0x69] sm:$0xff]
    %v1836 = vld [vmem:[%s1777 + $0x79] sm:$0xff]
    %v1837 = vld [vmem:[%s1777 + $0x81] sm:$0xff]
    %v1838 = vld [vmem:[%s1777 + $0x91] sm:$0xff]
    %v1839 = vld [vmem:[%s1777 + $0x99] sm:$0xff]
    %v1840 = vld [vmem:[%s1777 + $0xa9] sm:$0xff]
    %v1841 = vld [vmem:[%s1777 + $0xb1] sm:$0xff]
    %v1842 = vmul.f32 %v606, %v1826
    %v1843 = vmul.f32 %v606, %v1827
    %v1844 = vmul.f32 %v606, %v1828
    %v1845 = vmul.f32 %v606, %v1829
    %v1846 = vmul.f32 %v606, %v1830
    %v1847 = vmul.f32 %v606, %v1831
    %v1848 = vmul.f32 %v606, %v1832
    %v1849 = vmul.f32 %v606, %v1833
    %v1850 = vmul.f32 %v606, %v1834
    %v1851 = vmul.f32 %v606, %v1835
    %v1852 = vmul.f32 %v606, %v1836
    %v1853 = vmul.f32 %v606, %v1837
    %v1854 = vmul.f32 %v606, %v1838
    %v1855 = vmul.f32 %v606, %v1839
    %v1856 = vmul.f32 %v606, %v1840
    %v1857 = vmul.f32 %v606, %v1841
    %v1858 = vadd.f32 %v1810, %v1842
    %v1859 = vadd.f32 %v1811, %v1843
    %v1860 = vadd.f32 %v1812, %v1844
    %v1861 = vadd.f32 %v1813, %v1845
    %v1862 = vadd.f32 %v1814, %v1846
    %v1863 = vadd.f32 %v1815, %v1847
    %v1864 = vadd.f32 %v1816, %v1848
    %v1865 = vadd.f32 %v1817, %v1849
    %v1866 = vadd.f32 %v1818, %v1850
    %v1867 = vadd.f32 %v1819, %v1851
    %v1868 = vadd.f32 %v1820, %v1852
    %v1869 = vadd.f32 %v1821, %v1853
    %v1870 = vadd.f32 %v1822, %v1854
    %v1871 = vadd.f32 %v1823, %v1855
    %v1872 = vadd.f32 %v1824, %v1856
    %v1873 = vadd.f32 %v1825, %v1857
    %v1874 = vld [vmem:[%s1777 + $0x2] sm:$0xff]
    %v1875 = vld [vmem:[%s1777 + $0xa] sm:$0xff]
    %v1876 = vld [vmem:[%s1777 + $0x1a] sm:$0xff]
    %v1877 = vld [vmem:[%s1777 + $0x22] sm:$0xff]
    %v1878 = vld [vmem:[%s1777 + $0x32] sm:$0xff]
    %v1879 = vld [vmem:[%s1777 + $0x3a] sm:$0xff]
    %v1880 = vld [vmem:[%s1777 + $0x4a] sm:$0xff]
    %v1881 = vld [vmem:[%s1777 + $0x52] sm:$0xff]
    %v1882 = vld [vmem:[%s1777 + $0x62] sm:$0xff]
    %v1883 = vld [vmem:[%s1777 + $0x6a] sm:$0xff]
    %v1884 = vld [vmem:[%s1777 + $0x7a] sm:$0xff]
    %v1885 = vld [vmem:[%s1777 + $0x82] sm:$0xff]
    %v1886 = vld [vmem:[%s1777 + $0x92] sm:$0xff]
    %v1887 = vld [vmem:[%s1777 + $0x9a] sm:$0xff]
    %v1888 = vld [vmem:[%s1777 + $0xaa] sm:$0xff]
    %v1889 = vld [vmem:[%s1777 + $0xb2] sm:$0xff]
    %v1890 = vmul.f32 %v655, %v1874
    %v1891 = vmul.f32 %v655, %v1875
    %v1892 = vmul.f32 %v655, %v1876
    %v1893 = vmul.f32 %v655, %v1877
    %v1894 = vmul.f32 %v655, %v1878
    %v1895 = vmul.f32 %v655, %v1879
    %v1896 = vmul.f32 %v655, %v1880
    %v1897 = vmul.f32 %v655, %v1881
    %v1898 = vmul.f32 %v655, %v1882
    %v1899 = vmul.f32 %v655, %v1883
    %v1900 = vmul.f32 %v655, %v1884
    %v1901 = vmul.f32 %v655, %v1885
    %v1902 = vmul.f32 %v655, %v1886
    %v1903 = vmul.f32 %v655, %v1887
    %v1904 = vmul.f32 %v655, %v1888
    %v1905 = vmul.f32 %v655, %v1889
    %v1906 = vadd.f32 %v1858, %v1890
    %v1907 = vadd.f32 %v1859, %v1891
    %v1908 = vadd.f32 %v1860, %v1892
    %v1909 = vadd.f32 %v1861, %v1893
    %v1910 = vadd.f32 %v1862, %v1894
    %v1911 = vadd.f32 %v1863, %v1895
    %v1912 = vadd.f32 %v1864, %v1896
    %v1913 = vadd.f32 %v1865, %v1897
    %v1914 = vadd.f32 %v1866, %v1898
    %v1915 = vadd.f32 %v1867, %v1899
    %v1916 = vadd.f32 %v1868, %v1900
    %v1917 = vadd.f32 %v1869, %v1901
    %v1918 = vadd.f32 %v1870, %v1902
    %v1919 = vadd.f32 %v1871, %v1903
    %v1920 = vadd.f32 %v1872, %v1904
    %v1921 = vadd.f32 %v1873, %v1905
    %v1922 = vld [vmem:[%s1777 + $0x3] sm:$0xff]
    %v1923 = vld [vmem:[%s1777 + $0xb] sm:$0xff]
    %v1924 = vld [vmem:[%s1777 + $0x1b] sm:$0xff]
    %v1925 = vld [vmem:[%s1777 + $0x23] sm:$0xff]
    %v1926 = vld [vmem:[%s1777 + $0x33] sm:$0xff]
    %v1927 = vld [vmem:[%s1777 + $0x3b] sm:$0xff]
    %v1928 = vld [vmem:[%s1777 + $0x4b] sm:$0xff]
    %v1929 = vld [vmem:[%s1777 + $0x53] sm:$0xff]
    %v1930 = vld [vmem:[%s1777 + $0x63] sm:$0xff]
    %v1931 = vld [vmem:[%s1777 + $0x6b] sm:$0xff]
    %v1932 = vld [vmem:[%s1777 + $0x7b] sm:$0xff]
    %v1933 = vld [vmem:[%s1777 + $0x83] sm:$0xff]
    %v1934 = vld [vmem:[%s1777 + $0x93] sm:$0xff]
    %v1935 = vld [vmem:[%s1777 + $0x9b] sm:$0xff]
    %v1936 = vld [vmem:[%s1777 + $0xab] sm:$0xff]
    %v1937 = vld [vmem:[%s1777 + $0xb3] sm:$0xff]
    %v1938 = vmul.f32 %v704, %v1922
    %v1939 = vmul.f32 %v704, %v1923
    %v1940 = vmul.f32 %v704, %v1924
    %v1941 = vmul.f32 %v704, %v1925
    %v1942 = vmul.f32 %v704, %v1926
    %v1943 = vmul.f32 %v704, %v1927
    %v1944 = vmul.f32 %v704, %v1928
    %v1945 = vmul.f32 %v704, %v1929
    %v1946 = vmul.f32 %v704, %v1930
    %v1947 = vmul.f32 %v704, %v1931
    %v1948 = vmul.f32 %v704, %v1932
    %v1949 = vmul.f32 %v704, %v1933
    %v1950 = vmul.f32 %v704, %v1934
    %v1951 = vmul.f32 %v704, %v1935
    %v1952 = vmul.f32 %v704, %v1936
    %v1953 = vmul.f32 %v704, %v1937
    %v1954 = vadd.f32 %v1906, %v1938
    %v1955 = vadd.f32 %v1907, %v1939
    %v1956 = vadd.f32 %v1908, %v1940
    %v1957 = vadd.f32 %v1909, %v1941
    %v1958 = vadd.f32 %v1910, %v1942
    %v1959 = vadd.f32 %v1911, %v1943
    %v1960 = vadd.f32 %v1912, %v1944
    %v1961 = vadd.f32 %v1913, %v1945
    %v1962 = vadd.f32 %v1914, %v1946
    %v1963 = vadd.f32 %v1915, %v1947
    %v1964 = vadd.f32 %v1916, %v1948
    %v1965 = vadd.f32 %v1917, %v1949
    %v1966 = vadd.f32 %v1918, %v1950
    %v1967 = vadd.f32 %v1919, %v1951
    %v1968 = vadd.f32 %v1920, %v1952
    %v1969 = vadd.f32 %v1921, %v1953
    %v1970 = vld [vmem:[%s1777 + $0x4] sm:$0xff]
    %v1971 = vld [vmem:[%s1777 + $0xc] sm:$0xff]
    %v1972 = vld [vmem:[%s1777 + $0x1c] sm:$0xff]
    %v1973 = vld [vmem:[%s1777 + $0x24] sm:$0xff]
    %v1974 = vld [vmem:[%s1777 + $0x34] sm:$0xff]
    %v1975 = vld [vmem:[%s1777 + $0x3c] sm:$0xff]
    %v1976 = vld [vmem:[%s1777 + $0x4c] sm:$0xff]
    %v1977 = vld [vmem:[%s1777 + $0x54] sm:$0xff]
    %v1978 = vld [vmem:[%s1777 + $0x64] sm:$0xff]
    %v1979 = vld [vmem:[%s1777 + $0x6c] sm:$0xff]
    %v1980 = vld [vmem:[%s1777 + $0x7c] sm:$0xff]
    %v1981 = vld [vmem:[%s1777 + $0x84] sm:$0xff]
    %v1982 = vld [vmem:[%s1777 + $0x94] sm:$0xff]
    %v1983 = vld [vmem:[%s1777 + $0x9c] sm:$0xff]
    %v1984 = vld [vmem:[%s1777 + $0xac] sm:$0xff]
    %v1985 = vld [vmem:[%s1777 + $0xb4] sm:$0xff]
    %v1986 = vmul.f32 %v753, %v1970
    %v1987 = vmul.f32 %v753, %v1971
    %v1988 = vmul.f32 %v753, %v1972
    %v1989 = vmul.f32 %v753, %v1973
    %v1990 = vmul.f32 %v753, %v1974
    %v1991 = vmul.f32 %v753, %v1975
    %v1992 = vmul.f32 %v753, %v1976
    %v1993 = vmul.f32 %v753, %v1977
    %v1994 = vmul.f32 %v753, %v1978
    %v1995 = vmul.f32 %v753, %v1979
    %v1996 = vmul.f32 %v753, %v1980
    %v1997 = vmul.f32 %v753, %v1981
    %v1998 = vmul.f32 %v753, %v1982
    %v1999 = vmul.f32 %v753, %v1983
    %v2000 = vmul.f32 %v753, %v1984
    %v2001 = vmul.f32 %v753, %v1985
    %v2002 = vadd.f32 %v1954, %v1986
    %v2003 = vadd.f32 %v1955, %v1987
    %v2004 = vadd.f32 %v1956, %v1988
    %v2005 = vadd.f32 %v1957, %v1989
    %v2006 = vadd.f32 %v1958, %v1990
    %v2007 = vadd.f32 %v1959, %v1991
    %v2008 = vadd.f32 %v1960, %v1992
    %v2009 = vadd.f32 %v1961, %v1993
    %v2010 = vadd.f32 %v1962, %v1994
    %v2011 = vadd.f32 %v1963, %v1995
    %v2012 = vadd.f32 %v1964, %v1996
    %v2013 = vadd.f32 %v1965, %v1997
    %v2014 = vadd.f32 %v1966, %v1998
    %v2015 = vadd.f32 %v1967, %v1999
    %v2016 = vadd.f32 %v1968, %v2000
    %v2017 = vadd.f32 %v1969, %v2001
    %s2018 = scalar_lea.vmem %s1, 264
    %v2019 = vld [vmem:[%s2018] sm:$0xff]
    %v2020 = vld [vmem:[%s2018 + $0x8] sm:$0xff]
    %v2021 = vld [vmem:[%s2018 + $0x18] sm:$0xff]
    %v2022 = vld [vmem:[%s2018 + $0x20] sm:$0xff]
    %v2023 = vld [vmem:[%s2018 + $0x30] sm:$0xff]
    %v2024 = vld [vmem:[%s2018 + $0x38] sm:$0xff]
    %v2025 = vld [vmem:[%s2018 + $0x48] sm:$0xff]
    %v2026 = vld [vmem:[%s2018 + $0x50] sm:$0xff]
    %v2027 = vld [vmem:[%s2018 + $0x60] sm:$0xff]
    %v2028 = vld [vmem:[%s2018 + $0x68] sm:$0xff]
    %v2029 = vld [vmem:[%s2018 + $0x78] sm:$0xff]
    %v2030 = vld [vmem:[%s2018 + $0x80] sm:$0xff]
    %v2031 = vld [vmem:[%s2018 + $0x90] sm:$0xff]
    %v2032 = vld [vmem:[%s2018 + $0x98] sm:$0xff]
    %v2033 = vld [vmem:[%s2018 + $0xa8] sm:$0xff]
    %v2034 = vld [vmem:[%s2018 + $0xb0] sm:$0xff]
    %v2035 = vmul.f32 %v803, %v2019
    %v2036 = vmul.f32 %v803, %v2020
    %v2037 = vmul.f32 %v803, %v2021
    %v2038 = vmul.f32 %v803, %v2022
    %v2039 = vmul.f32 %v803, %v2023
    %v2040 = vmul.f32 %v803, %v2024
    %v2041 = vmul.f32 %v803, %v2025
    %v2042 = vmul.f32 %v803, %v2026
    %v2043 = vmul.f32 %v803, %v2027
    %v2044 = vmul.f32 %v803, %v2028
    %v2045 = vmul.f32 %v803, %v2029
    %v2046 = vmul.f32 %v803, %v2030
    %v2047 = vmul.f32 %v803, %v2031
    %v2048 = vmul.f32 %v803, %v2032
    %v2049 = vmul.f32 %v803, %v2033
    %v2050 = vmul.f32 %v803, %v2034
    %v2051 = vadd.f32 %v2002, %v2035
    %v2052 = vadd.f32 %v2003, %v2036
    %v2053 = vadd.f32 %v2004, %v2037
    %v2054 = vadd.f32 %v2005, %v2038
    %v2055 = vadd.f32 %v2006, %v2039
    %v2056 = vadd.f32 %v2007, %v2040
    %v2057 = vadd.f32 %v2008, %v2041
    %v2058 = vadd.f32 %v2009, %v2042
    %v2059 = vadd.f32 %v2010, %v2043
    %v2060 = vadd.f32 %v2011, %v2044
    %v2061 = vadd.f32 %v2012, %v2045
    %v2062 = vadd.f32 %v2013, %v2046
    %v2063 = vadd.f32 %v2014, %v2047
    %v2064 = vadd.f32 %v2015, %v2048
    %v2065 = vadd.f32 %v2016, %v2049
    %v2066 = vadd.f32 %v2017, %v2050
    %v2067 = vld [vmem:[%s2018 + $0x1] sm:$0xff]
    %v2068 = vld [vmem:[%s2018 + $0x9] sm:$0xff]
    %v2069 = vld [vmem:[%s2018 + $0x19] sm:$0xff]
    %v2070 = vld [vmem:[%s2018 + $0x21] sm:$0xff]
    %v2071 = vld [vmem:[%s2018 + $0x31] sm:$0xff]
    %v2072 = vld [vmem:[%s2018 + $0x39] sm:$0xff]
    %v2073 = vld [vmem:[%s2018 + $0x49] sm:$0xff]
    %v2074 = vld [vmem:[%s2018 + $0x51] sm:$0xff]
    %v2075 = vld [vmem:[%s2018 + $0x61] sm:$0xff]
    %v2076 = vld [vmem:[%s2018 + $0x69] sm:$0xff]
    %v2077 = vld [vmem:[%s2018 + $0x79] sm:$0xff]
    %v2078 = vld [vmem:[%s2018 + $0x81] sm:$0xff]
    %v2079 = vld [vmem:[%s2018 + $0x91] sm:$0xff]
    %v2080 = vld [vmem:[%s2018 + $0x99] sm:$0xff]
    %v2081 = vld [vmem:[%s2018 + $0xa9] sm:$0xff]
    %v2082 = vld [vmem:[%s2018 + $0xb1] sm:$0xff]
    %v2083 = vmul.f32 %v852, %v2067
    %v2084 = vmul.f32 %v852, %v2068
    %v2085 = vmul.f32 %v852, %v2069
    %v2086 = vmul.f32 %v852, %v2070
    %v2087 = vmul.f32 %v852, %v2071
    %v2088 = vmul.f32 %v852, %v2072
    %v2089 = vmul.f32 %v852, %v2073
    %v2090 = vmul.f32 %v852, %v2074
    %v2091 = vmul.f32 %v852, %v2075
    %v2092 = vmul.f32 %v852, %v2076
    %v2093 = vmul.f32 %v852, %v2077
    %v2094 = vmul.f32 %v852, %v2078
    %v2095 = vmul.f32 %v852, %v2079
    %v2096 = vmul.f32 %v852, %v2080
    %v2097 = vmul.f32 %v852, %v2081
    %v2098 = vmul.f32 %v852, %v2082
    %v2099 = vadd.f32 %v2051, %v2083
    %v2100 = vadd.f32 %v2052, %v2084
    %v2101 = vadd.f32 %v2053, %v2085
    %v2102 = vadd.f32 %v2054, %v2086
    %v2103 = vadd.f32 %v2055, %v2087
    %v2104 = vadd.f32 %v2056, %v2088
    %v2105 = vadd.f32 %v2057, %v2089
    %v2106 = vadd.f32 %v2058, %v2090
    %v2107 = vadd.f32 %v2059, %v2091
    %v2108 = vadd.f32 %v2060, %v2092
    %v2109 = vadd.f32 %v2061, %v2093
    %v2110 = vadd.f32 %v2062, %v2094
    %v2111 = vadd.f32 %v2063, %v2095
    %v2112 = vadd.f32 %v2064, %v2096
    %v2113 = vadd.f32 %v2065, %v2097
    %v2114 = vadd.f32 %v2066, %v2098
    %v2115 = vld [vmem:[%s2018 + $0x2] sm:$0xff]
    %v2116 = vld [vmem:[%s2018 + $0xa] sm:$0xff]
    %v2117 = vld [vmem:[%s2018 + $0x1a] sm:$0xff]
    %v2118 = vld [vmem:[%s2018 + $0x22] sm:$0xff]
    %v2119 = vld [vmem:[%s2018 + $0x32] sm:$0xff]
    %v2120 = vld [vmem:[%s2018 + $0x3a] sm:$0xff]
    %v2121 = vld [vmem:[%s2018 + $0x4a] sm:$0xff]
    %v2122 = vld [vmem:[%s2018 + $0x52] sm:$0xff]
    %v2123 = vld [vmem:[%s2018 + $0x62] sm:$0xff]
    %v2124 = vld [vmem:[%s2018 + $0x6a] sm:$0xff]
    %v2125 = vld [vmem:[%s2018 + $0x7a] sm:$0xff]
    %v2126 = vld [vmem:[%s2018 + $0x82] sm:$0xff]
    %v2127 = vld [vmem:[%s2018 + $0x92] sm:$0xff]
    %v2128 = vld [vmem:[%s2018 + $0x9a] sm:$0xff]
    %v2129 = vld [vmem:[%s2018 + $0xaa] sm:$0xff]
    %v2130 = vld [vmem:[%s2018 + $0xb2] sm:$0xff]
    %v2131 = vmul.f32 %v901, %v2115
    %v2132 = vmul.f32 %v901, %v2116
    %v2133 = vmul.f32 %v901, %v2117
    %v2134 = vmul.f32 %v901, %v2118
    %v2135 = vmul.f32 %v901, %v2119
    %v2136 = vmul.f32 %v901, %v2120
    %v2137 = vmul.f32 %v901, %v2121
    %v2138 = vmul.f32 %v901, %v2122
    %v2139 = vmul.f32 %v901, %v2123
    %v2140 = vmul.f32 %v901, %v2124
    %v2141 = vmul.f32 %v901, %v2125
    %v2142 = vmul.f32 %v901, %v2126
    %v2143 = vmul.f32 %v901, %v2127
    %v2144 = vmul.f32 %v901, %v2128
    %v2145 = vmul.f32 %v901, %v2129
    %v2146 = vmul.f32 %v901, %v2130
    %v2147 = vadd.f32 %v2099, %v2131
    %v2148 = vadd.f32 %v2100, %v2132
    %v2149 = vadd.f32 %v2101, %v2133
    %v2150 = vadd.f32 %v2102, %v2134
    %v2151 = vadd.f32 %v2103, %v2135
    %v2152 = vadd.f32 %v2104, %v2136
    %v2153 = vadd.f32 %v2105, %v2137
    %v2154 = vadd.f32 %v2106, %v2138
    %v2155 = vadd.f32 %v2107, %v2139
    %v2156 = vadd.f32 %v2108, %v2140
    %v2157 = vadd.f32 %v2109, %v2141
    %v2158 = vadd.f32 %v2110, %v2142
    %v2159 = vadd.f32 %v2111, %v2143
    %v2160 = vadd.f32 %v2112, %v2144
    %v2161 = vadd.f32 %v2113, %v2145
    %v2162 = vadd.f32 %v2114, %v2146
    %v2163 = vld [vmem:[%s2018 + $0x3] sm:$0xff]
    %v2164 = vld [vmem:[%s2018 + $0xb] sm:$0xff]
    %v2165 = vld [vmem:[%s2018 + $0x1b] sm:$0xff]
    %v2166 = vld [vmem:[%s2018 + $0x23] sm:$0xff]
    %v2167 = vld [vmem:[%s2018 + $0x33] sm:$0xff]
    %v2168 = vld [vmem:[%s2018 + $0x3b] sm:$0xff]
    %v2169 = vld [vmem:[%s2018 + $0x4b] sm:$0xff]
    %v2170 = vld [vmem:[%s2018 + $0x53] sm:$0xff]
    %v2171 = vld [vmem:[%s2018 + $0x63] sm:$0xff]
    %v2172 = vld [vmem:[%s2018 + $0x6b] sm:$0xff]
    %v2173 = vld [vmem:[%s2018 + $0x7b] sm:$0xff]
    %v2174 = vld [vmem:[%s2018 + $0x83] sm:$0xff]
    %v2175 = vld [vmem:[%s2018 + $0x93] sm:$0xff]
    %v2176 = vld [vmem:[%s2018 + $0x9b] sm:$0xff]
    %v2177 = vld [vmem:[%s2018 + $0xab] sm:$0xff]
    %v2178 = vld [vmem:[%s2018 + $0xb3] sm:$0xff]
    %v2179 = vmul.f32 %v950, %v2163
    %v2180 = vmul.f32 %v950, %v2164
    %v2181 = vmul.f32 %v950, %v2165
    %v2182 = vmul.f32 %v950, %v2166
    %v2183 = vmul.f32 %v950, %v2167
    %v2184 = vmul.f32 %v950, %v2168
    %v2185 = vmul.f32 %v950, %v2169
    %v2186 = vmul.f32 %v950, %v2170
    %v2187 = vmul.f32 %v950, %v2171
    %v2188 = vmul.f32 %v950, %v2172
    %v2189 = vmul.f32 %v950, %v2173
    %v2190 = vmul.f32 %v950, %v2174
    %v2191 = vmul.f32 %v950, %v2175
    %v2192 = vmul.f32 %v950, %v2176
    %v2193 = vmul.f32 %v950, %v2177
    %v2194 = vmul.f32 %v950, %v2178
    %v2195 = vadd.f32 %v2147, %v2179
    %v2196 = vadd.f32 %v2148, %v2180
    %v2197 = vadd.f32 %v2149, %v2181
    %v2198 = vadd.f32 %v2150, %v2182
    %v2199 = vadd.f32 %v2151, %v2183
    %v2200 = vadd.f32 %v2152, %v2184
    %v2201 = vadd.f32 %v2153, %v2185
    %v2202 = vadd.f32 %v2154, %v2186
    %v2203 = vadd.f32 %v2155, %v2187
    %v2204 = vadd.f32 %v2156, %v2188
    %v2205 = vadd.f32 %v2157, %v2189
    %v2206 = vadd.f32 %v2158, %v2190
    %v2207 = vadd.f32 %v2159, %v2191
    %v2208 = vadd.f32 %v2160, %v2192
    %v2209 = vadd.f32 %v2161, %v2193
    %v2210 = vadd.f32 %v2162, %v2194
    %v2211 = vld [vmem:[%s2018 + $0x4] sm:$0xff]
    %v2212 = vld [vmem:[%s2018 + $0xc] sm:$0xff]
    %v2213 = vld [vmem:[%s2018 + $0x1c] sm:$0xff]
    %v2214 = vld [vmem:[%s2018 + $0x24] sm:$0xff]
    %v2215 = vld [vmem:[%s2018 + $0x34] sm:$0xff]
    %v2216 = vld [vmem:[%s2018 + $0x3c] sm:$0xff]
    %v2217 = vld [vmem:[%s2018 + $0x4c] sm:$0xff]
    %v2218 = vld [vmem:[%s2018 + $0x54] sm:$0xff]
    %v2219 = vld [vmem:[%s2018 + $0x64] sm:$0xff]
    %v2220 = vld [vmem:[%s2018 + $0x6c] sm:$0xff]
    %v2221 = vld [vmem:[%s2018 + $0x7c] sm:$0xff]
    %v2222 = vld [vmem:[%s2018 + $0x84] sm:$0xff]
    %v2223 = vld [vmem:[%s2018 + $0x94] sm:$0xff]
    %v2224 = vld [vmem:[%s2018 + $0x9c] sm:$0xff]
    %v2225 = vld [vmem:[%s2018 + $0xac] sm:$0xff]
    %v2226 = vld [vmem:[%s2018 + $0xb4] sm:$0xff]
    %v2227 = vmul.f32 %v999, %v2211
    %v2228 = vmul.f32 %v999, %v2212
    %v2229 = vmul.f32 %v999, %v2213
    %v2230 = vmul.f32 %v999, %v2214
    %v2231 = vmul.f32 %v999, %v2215
    %v2232 = vmul.f32 %v999, %v2216
    %v2233 = vmul.f32 %v999, %v2217
    %v2234 = vmul.f32 %v999, %v2218
    %v2235 = vmul.f32 %v999, %v2219
    %v2236 = vmul.f32 %v999, %v2220
    %v2237 = vmul.f32 %v999, %v2221
    %v2238 = vmul.f32 %v999, %v2222
    %v2239 = vmul.f32 %v999, %v2223
    %v2240 = vmul.f32 %v999, %v2224
    %v2241 = vmul.f32 %v999, %v2225
    %v2242 = vmul.f32 %v999, %v2226
    %v2243 = vadd.f32 %v2195, %v2227
    %v2244 = vadd.f32 %v2196, %v2228
    %v2245 = vadd.f32 %v2197, %v2229
    %v2246 = vadd.f32 %v2198, %v2230
    %v2247 = vadd.f32 %v2199, %v2231
    %v2248 = vadd.f32 %v2200, %v2232
    %v2249 = vadd.f32 %v2201, %v2233
    %v2250 = vadd.f32 %v2202, %v2234
    %v2251 = vadd.f32 %v2203, %v2235
    %v2252 = vadd.f32 %v2204, %v2236
    %v2253 = vadd.f32 %v2205, %v2237
    %v2254 = vadd.f32 %v2206, %v2238
    %v2255 = vadd.f32 %v2207, %v2239
    %v2256 = vadd.f32 %v2208, %v2240
    %v2257 = vadd.f32 %v2209, %v2241
    %v2258 = vadd.f32 %v2210, %v2242
    %s2259 = scalar_lea.vmem %s1, 288
    %v2260 = vld [vmem:[%s2259] sm:$0xff]
    %v2261 = vld [vmem:[%s2259 + $0x8] sm:$0xff]
    %v2262 = vld [vmem:[%s2259 + $0x18] sm:$0xff]
    %v2263 = vld [vmem:[%s2259 + $0x20] sm:$0xff]
    %v2264 = vld [vmem:[%s2259 + $0x30] sm:$0xff]
    %v2265 = vld [vmem:[%s2259 + $0x38] sm:$0xff]
    %v2266 = vld [vmem:[%s2259 + $0x48] sm:$0xff]
    %v2267 = vld [vmem:[%s2259 + $0x50] sm:$0xff]
    %v2268 = vld [vmem:[%s2259 + $0x60] sm:$0xff]
    %v2269 = vld [vmem:[%s2259 + $0x68] sm:$0xff]
    %v2270 = vld [vmem:[%s2259 + $0x78] sm:$0xff]
    %v2271 = vld [vmem:[%s2259 + $0x80] sm:$0xff]
    %v2272 = vld [vmem:[%s2259 + $0x90] sm:$0xff]
    %v2273 = vld [vmem:[%s2259 + $0x98] sm:$0xff]
    %v2274 = vld [vmem:[%s2259 + $0xa8] sm:$0xff]
    %v2275 = vld [vmem:[%s2259 + $0xb0] sm:$0xff]
    %v2276 = vmul.f32 %v1049, %v2260
    %v2277 = vmul.f32 %v1049, %v2261
    %v2278 = vmul.f32 %v1049, %v2262
    %v2279 = vmul.f32 %v1049, %v2263
    %v2280 = vmul.f32 %v1049, %v2264
    %v2281 = vmul.f32 %v1049, %v2265
    %v2282 = vmul.f32 %v1049, %v2266
    %v2283 = vmul.f32 %v1049, %v2267
    %v2284 = vmul.f32 %v1049, %v2268
    %v2285 = vmul.f32 %v1049, %v2269
    %v2286 = vmul.f32 %v1049, %v2270
    %v2287 = vmul.f32 %v1049, %v2271
    %v2288 = vmul.f32 %v1049, %v2272
    %v2289 = vmul.f32 %v1049, %v2273
    %v2290 = vmul.f32 %v1049, %v2274
    %v2291 = vmul.f32 %v1049, %v2275
    %v2292 = vadd.f32 %v2243, %v2276
    %v2293 = vadd.f32 %v2244, %v2277
    %v2294 = vadd.f32 %v2245, %v2278
    %v2295 = vadd.f32 %v2246, %v2279
    %v2296 = vadd.f32 %v2247, %v2280
    %v2297 = vadd.f32 %v2248, %v2281
    %v2298 = vadd.f32 %v2249, %v2282
    %v2299 = vadd.f32 %v2250, %v2283
    %v2300 = vadd.f32 %v2251, %v2284
    %v2301 = vadd.f32 %v2252, %v2285
    %v2302 = vadd.f32 %v2253, %v2286
    %v2303 = vadd.f32 %v2254, %v2287
    %v2304 = vadd.f32 %v2255, %v2288
    %v2305 = vadd.f32 %v2256, %v2289
    %v2306 = vadd.f32 %v2257, %v2290
    %v2307 = vadd.f32 %v2258, %v2291
    %v2308 = vld [vmem:[%s2259 + $0x1] sm:$0xff]
    %v2309 = vld [vmem:[%s2259 + $0x9] sm:$0xff]
    %v2310 = vld [vmem:[%s2259 + $0x19] sm:$0xff]
    %v2311 = vld [vmem:[%s2259 + $0x21] sm:$0xff]
    %v2312 = vld [vmem:[%s2259 + $0x31] sm:$0xff]
    %v2313 = vld [vmem:[%s2259 + $0x39] sm:$0xff]
    %v2314 = vld [vmem:[%s2259 + $0x49] sm:$0xff]
    %v2315 = vld [vmem:[%s2259 + $0x51] sm:$0xff]
    %v2316 = vld [vmem:[%s2259 + $0x61] sm:$0xff]
    %v2317 = vld [vmem:[%s2259 + $0x69] sm:$0xff]
    %v2318 = vld [vmem:[%s2259 + $0x79] sm:$0xff]
    %v2319 = vld [vmem:[%s2259 + $0x81] sm:$0xff]
    %v2320 = vld [vmem:[%s2259 + $0x91] sm:$0xff]
    %v2321 = vld [vmem:[%s2259 + $0x99] sm:$0xff]
    %v2322 = vld [vmem:[%s2259 + $0xa9] sm:$0xff]
    %v2323 = vld [vmem:[%s2259 + $0xb1] sm:$0xff]
    %v2324 = vmul.f32 %v1098, %v2308
    %v2325 = vmul.f32 %v1098, %v2309
    %v2326 = vmul.f32 %v1098, %v2310
    %v2327 = vmul.f32 %v1098, %v2311
    %v2328 = vmul.f32 %v1098, %v2312
    %v2329 = vmul.f32 %v1098, %v2313
    %v2330 = vmul.f32 %v1098, %v2314
    %v2331 = vmul.f32 %v1098, %v2315
    %v2332 = vmul.f32 %v1098, %v2316
    %v2333 = vmul.f32 %v1098, %v2317
    %v2334 = vmul.f32 %v1098, %v2318
    %v2335 = vmul.f32 %v1098, %v2319
    %v2336 = vmul.f32 %v1098, %v2320
    %v2337 = vmul.f32 %v1098, %v2321
    %v2338 = vmul.f32 %v1098, %v2322
    %v2339 = vmul.f32 %v1098, %v2323
    %v2340 = vadd.f32 %v2292, %v2324
    %v2341 = vadd.f32 %v2293, %v2325
    %v2342 = vadd.f32 %v2294, %v2326
    %v2343 = vadd.f32 %v2295, %v2327
    %v2344 = vadd.f32 %v2296, %v2328
    %v2345 = vadd.f32 %v2297, %v2329
    %v2346 = vadd.f32 %v2298, %v2330
    %v2347 = vadd.f32 %v2299, %v2331
    %v2348 = vadd.f32 %v2300, %v2332
    %v2349 = vadd.f32 %v2301, %v2333
    %v2350 = vadd.f32 %v2302, %v2334
    %v2351 = vadd.f32 %v2303, %v2335
    %v2352 = vadd.f32 %v2304, %v2336
    %v2353 = vadd.f32 %v2305, %v2337
    %v2354 = vadd.f32 %v2306, %v2338
    %v2355 = vadd.f32 %v2307, %v2339
    %v2356 = vld [vmem:[%s2259 + $0x2] sm:$0xff]
    %v2357 = vld [vmem:[%s2259 + $0xa] sm:$0xff]
    %v2358 = vld [vmem:[%s2259 + $0x1a] sm:$0xff]
    %v2359 = vld [vmem:[%s2259 + $0x22] sm:$0xff]
    %v2360 = vld [vmem:[%s2259 + $0x32] sm:$0xff]
    %v2361 = vld [vmem:[%s2259 + $0x3a] sm:$0xff]
    %v2362 = vld [vmem:[%s2259 + $0x4a] sm:$0xff]
    %v2363 = vld [vmem:[%s2259 + $0x52] sm:$0xff]
    %v2364 = vld [vmem:[%s2259 + $0x62] sm:$0xff]
    %v2365 = vld [vmem:[%s2259 + $0x6a] sm:$0xff]
    %v2366 = vld [vmem:[%s2259 + $0x7a] sm:$0xff]
    %v2367 = vld [vmem:[%s2259 + $0x82] sm:$0xff]
    %v2368 = vld [vmem:[%s2259 + $0x92] sm:$0xff]
    %v2369 = vld [vmem:[%s2259 + $0x9a] sm:$0xff]
    %v2370 = vld [vmem:[%s2259 + $0xaa] sm:$0xff]
    %v2371 = vld [vmem:[%s2259 + $0xb2] sm:$0xff]
    %v2372 = vmul.f32 %v1147, %v2356
    %v2373 = vmul.f32 %v1147, %v2357
    %v2374 = vmul.f32 %v1147, %v2358
    %v2375 = vmul.f32 %v1147, %v2359
    %v2376 = vmul.f32 %v1147, %v2360
    %v2377 = vmul.f32 %v1147, %v2361
    %v2378 = vmul.f32 %v1147, %v2362
    %v2379 = vmul.f32 %v1147, %v2363
    %v2380 = vmul.f32 %v1147, %v2364
    %v2381 = vmul.f32 %v1147, %v2365
    %v2382 = vmul.f32 %v1147, %v2366
    %v2383 = vmul.f32 %v1147, %v2367
    %v2384 = vmul.f32 %v1147, %v2368
    %v2385 = vmul.f32 %v1147, %v2369
    %v2386 = vmul.f32 %v1147, %v2370
    %v2387 = vmul.f32 %v1147, %v2371
    %v2388 = vadd.f32 %v2340, %v2372
    %v2389 = vadd.f32 %v2341, %v2373
    %v2390 = vadd.f32 %v2342, %v2374
    %v2391 = vadd.f32 %v2343, %v2375
    %v2392 = vadd.f32 %v2344, %v2376
    %v2393 = vadd.f32 %v2345, %v2377
    %v2394 = vadd.f32 %v2346, %v2378
    %v2395 = vadd.f32 %v2347, %v2379
    %v2396 = vadd.f32 %v2348, %v2380
    %v2397 = vadd.f32 %v2349, %v2381
    %v2398 = vadd.f32 %v2350, %v2382
    %v2399 = vadd.f32 %v2351, %v2383
    %v2400 = vadd.f32 %v2352, %v2384
    %v2401 = vadd.f32 %v2353, %v2385
    %v2402 = vadd.f32 %v2354, %v2386
    %v2403 = vadd.f32 %v2355, %v2387
    %v2404 = vld [vmem:[%s2259 + $0x3] sm:$0xff]
    %v2405 = vld [vmem:[%s2259 + $0xb] sm:$0xff]
    %v2406 = vld [vmem:[%s2259 + $0x1b] sm:$0xff]
    %v2407 = vld [vmem:[%s2259 + $0x23] sm:$0xff]
    %v2408 = vld [vmem:[%s2259 + $0x33] sm:$0xff]
    %v2409 = vld [vmem:[%s2259 + $0x3b] sm:$0xff]
    %v2410 = vld [vmem:[%s2259 + $0x4b] sm:$0xff]
    %v2411 = vld [vmem:[%s2259 + $0x53] sm:$0xff]
    %v2412 = vld [vmem:[%s2259 + $0x63] sm:$0xff]
    %v2413 = vld [vmem:[%s2259 + $0x6b] sm:$0xff]
    %v2414 = vld [vmem:[%s2259 + $0x7b] sm:$0xff]
    %v2415 = vld [vmem:[%s2259 + $0x83] sm:$0xff]
    %v2416 = vld [vmem:[%s2259 + $0x93] sm:$0xff]
    %v2417 = vld [vmem:[%s2259 + $0x9b] sm:$0xff]
    %v2418 = vld [vmem:[%s2259 + $0xab] sm:$0xff]
    %v2419 = vld [vmem:[%s2259 + $0xb3] sm:$0xff]
    %v2420 = vmul.f32 %v1196, %v2404
    %v2421 = vmul.f32 %v1196, %v2405
    %v2422 = vmul.f32 %v1196, %v2406
    %v2423 = vmul.f32 %v1196, %v2407
    %v2424 = vmul.f32 %v1196, %v2408
    %v2425 = vmul.f32 %v1196, %v2409
    %v2426 = vmul.f32 %v1196, %v2410
    %v2427 = vmul.f32 %v1196, %v2411
    %v2428 = vmul.f32 %v1196, %v2412
    %v2429 = vmul.f32 %v1196, %v2413
    %v2430 = vmul.f32 %v1196, %v2414
    %v2431 = vmul.f32 %v1196, %v2415
    %v2432 = vmul.f32 %v1196, %v2416
    %v2433 = vmul.f32 %v1196, %v2417
    %v2434 = vmul.f32 %v1196, %v2418
    %v2435 = vmul.f32 %v1196, %v2419
    %v2436 = vadd.f32 %v2388, %v2420
    %v2437 = vadd.f32 %v2389, %v2421
    %v2438 = vadd.f32 %v2390, %v2422
    %v2439 = vadd.f32 %v2391, %v2423
    %v2440 = vadd.f32 %v2392, %v2424
    %v2441 = vadd.f32 %v2393, %v2425
    %v2442 = vadd.f32 %v2394, %v2426
    %v2443 = vadd.f32 %v2395, %v2427
    %v2444 = vadd.f32 %v2396, %v2428
    %v2445 = vadd.f32 %v2397, %v2429
    %v2446 = vadd.f32 %v2398, %v2430
    %v2447 = vadd.f32 %v2399, %v2431
    %v2448 = vadd.f32 %v2400, %v2432
    %v2449 = vadd.f32 %v2401, %v2433
    %v2450 = vadd.f32 %v2402, %v2434
    %v2451 = vadd.f32 %v2403, %v2435
    %v2452 = vld [vmem:[%s2259 + $0x4] sm:$0xff]
    %v2453 = vld [vmem:[%s2259 + $0xc] sm:$0xff]
    %v2454 = vld [vmem:[%s2259 + $0x1c] sm:$0xff]
    %v2455 = vld [vmem:[%s2259 + $0x24] sm:$0xff]
    %v2456 = vld [vmem:[%s2259 + $0x34] sm:$0xff]
    %v2457 = vld [vmem:[%s2259 + $0x3c] sm:$0xff]
    %v2458 = vld [vmem:[%s2259 + $0x4c] sm:$0xff]
    %v2459 = vld [vmem:[%s2259 + $0x54] sm:$0xff]
    %v2460 = vld [vmem:[%s2259 + $0x64] sm:$0xff]
    %v2461 = vld [vmem:[%s2259 + $0x6c] sm:$0xff]
    %v2462 = vld [vmem:[%s2259 + $0x7c] sm:$0xff]
    %v2463 = vld [vmem:[%s2259 + $0x84] sm:$0xff]
    %v2464 = vld [vmem:[%s2259 + $0x94] sm:$0xff]
    %v2465 = vld [vmem:[%s2259 + $0x9c] sm:$0xff]
    %v2466 = vld [vmem:[%s2259 + $0xac] sm:$0xff]
    %v2467 = vld [vmem:[%s2259 + $0xb4] sm:$0xff]
    %v2468 = vmul.f32 %v1245, %v2452
    %v2469 = vmul.f32 %v1245, %v2453
    %v2470 = vmul.f32 %v1245, %v2454
    %v2471 = vmul.f32 %v1245, %v2455
    %v2472 = vmul.f32 %v1245, %v2456
    %v2473 = vmul.f32 %v1245, %v2457
    %v2474 = vmul.f32 %v1245, %v2458
    %v2475 = vmul.f32 %v1245, %v2459
    %v2476 = vmul.f32 %v1245, %v2460
    %v2477 = vmul.f32 %v1245, %v2461
    %v2478 = vmul.f32 %v1245, %v2462
    %v2479 = vmul.f32 %v1245, %v2463
    %v2480 = vmul.f32 %v1245, %v2464
    %v2481 = vmul.f32 %v1245, %v2465
    %v2482 = vmul.f32 %v1245, %v2466
    %v2483 = vmul.f32 %v1245, %v2467
    %v2484 = vadd.f32 %v2436, %v2468
    %v2485 = vadd.f32 %v2437, %v2469
    %v2486 = vadd.f32 %v2438, %v2470
    %v2487 = vadd.f32 %v2439, %v2471
    %v2488 = vadd.f32 %v2440, %v2472
    %v2489 = vadd.f32 %v2441, %v2473
    %v2490 = vadd.f32 %v2442, %v2474
    %v2491 = vadd.f32 %v2443, %v2475
    %v2492 = vadd.f32 %v2444, %v2476
    %v2493 = vadd.f32 %v2445, %v2477
    %v2494 = vadd.f32 %v2446, %v2478
    %v2495 = vadd.f32 %v2447, %v2479
    %v2496 = vadd.f32 %v2448, %v2480
    %v2497 = vadd.f32 %v2449, %v2481
    %v2498 = vadd.f32 %v2450, %v2482
    %v2499 = vadd.f32 %v2451, %v2483
    %s2500 = scalar_lea.vmem %s2, 128
    %2501 = vst.msk [vmem:[%s2500] sm:$0xff] %vm1278, %v2484
    %2502 = vst.msk [vmem:[%s2500 + $0x8] sm:$0xff] %vm1278, %v2485
    %2503 = vst.msk [vmem:[%s2500 + $0x10] sm:$0xff] %vm1278, %v2486
    %2504 = vst.msk [vmem:[%s2500 + $0x18] sm:$0xff] %vm1278, %v2487
    %2505 = vst.msk [vmem:[%s2500 + $0x20] sm:$0xff] %vm1278, %v2488
    %2506 = vst.msk [vmem:[%s2500 + $0x28] sm:$0xff] %vm1278, %v2489
    %2507 = vst.msk [vmem:[%s2500 + $0x30] sm:$0xff] %vm1278, %v2490
    %2508 = vst.msk [vmem:[%s2500 + $0x38] sm:$0xff] %vm1278, %v2491
    %2509 = vst.msk [vmem:[%s2500 + $0x40] sm:$0xff] %vm1278, %v2492
    %2510 = vst.msk [vmem:[%s2500 + $0x48] sm:$0xff] %vm1278, %v2493
    %2511 = vst.msk [vmem:[%s2500 + $0x50] sm:$0xff] %vm1278, %v2494
    %2512 = vst.msk [vmem:[%s2500 + $0x58] sm:$0xff] %vm1278, %v2495
    %2513 = vst.msk [vmem:[%s2500 + $0x60] sm:$0xff] %vm1278, %v2496
    %2514 = vst.msk [vmem:[%s2500 + $0x68] sm:$0xff] %vm1278, %v2497
    %2515 = vst.msk [vmem:[%s2500 + $0x70] sm:$0xff] %vm1278, %v2498
    %2516 = vst.msk [vmem:[%s2500 + $0x78] sm:$0xff] %vm1278, %v2499
    // Predicated region
    $region14: #{preconv_forward.1} parent=1 // pred_check
      _
    $region15: #{preconv_forward.1} parent=1 // pred_check_branch
      %2518 = sbr.rel (0) target = $region17
    $region16: #{preconv_forward.1} parent=1 // pred_region
      _
    $region17: #{preconv_forward.1} parent=1 // pred_fallthru
      _
    // Predicated region
    $region18: #{preconv_forward.1} parent=1 // pred_check
      _
    $region19: #{preconv_forward.1} parent=1 // pred_check_branch
      %2520 = sbr.rel (0) target = $region21
    $region20: #{preconv_forward.1} parent=1 // pred_region
      _
    $region21: #{preconv_forward.1} parent=1 // pred_fallthru
      _
    %2521 = vsyncpa [#allocation3], 1

</llo_original>
